<compile_context>
chip_gen: v5e
topology: v5e:2x2
jax: 0.10.0
libtpu: 0.0.40
codegen_flags: <defaults>
</compile_context>

<pallas_src>
import functools

import jax
import jax.numpy as jnp
from jax import lax
from jax.experimental import pallas as pl
from jax.experimental.pallas import tpu as pltpu
import numpy as np


def _decoder_kernel(x_ref, wih0_ref, whh0_ref, b0_ref, wih1_ref, whh1_ref,
                    b1_ref, wout_ref, bout_ref, out_ref,
                    xproj_ref, h1_all_ref, h2_all_ref, *, seq_len, batch):
    """2-layer LSTM + output projection for one vocab tile.

    x_ref:     (T*B, E)   time-major flattened inputs (rows t*B + b), weight dtype
    wih*_ref:  (E|H, 4H)  input-to-hidden weights (weight dtype)
    whh*_ref:  (H, 4H)    hidden-to-hidden weights (weight dtype)
    b*_ref:    (1, 4H)    combined LSTM biases (f32)
    wout_ref:  (H, TV)    output-projection tile for this grid step
    bout_ref:  (1, TV)
    out_ref:   (T*B, TV)  logits tile (f32)
    xproj_ref: (T*B, 4H)  f32 scratch, reused for layer-0 and layer-1 projections
    h1_all_ref/h2_all_ref: (T*B, H) f32 scratch holding all hidden states
    """
    T, B = seq_len, batch
    H = whh0_ref.shape[0]
    cdt = wih0_ref.dtype  # MXU operand dtype (f32 or bf16)

    # Hoisted once (JAX does not CSE broadcast_in_dim / iota inside loops).
    if H % 128 != 0:
        lane = lax.broadcasted_iota(jnp.int32, (B, 4 * H), 1)
        g_mask = (lane >= 2 * H) & (lane < 3 * H)

    def split_activate(gates):
        """(B, 4H) f32 pre-activations -> (i, f, g, o) in PyTorch gate order."""
        if H % 128 == 0:
            # Lane-aligned per-gate slices: tanh only on the g gate -> ~2x less
            # EUP work on the serial recurrence path.
            i = jax.nn.sigmoid(gates[:, 0 * H:1 * H])
            f = jax.nn.sigmoid(gates[:, 1 * H:2 * H])
            g = jnp.tanh(gates[:, 2 * H:3 * H])
            o = jax.nn.sigmoid(gates[:, 3 * H:4 * H])
            return i, f, g, o
        # Small H (< 128 lanes per gate): full-vreg activations + lane-mask select
        # to avoid sub-lane slices.
        act = jnp.where(g_mask, jnp.tanh(gates), jax.nn.sigmoid(gates))
        return (act[:, 0 * H:1 * H], act[:, 1 * H:2 * H],
                act[:, 2 * H:3 * H], act[:, 3 * H:4 * H])

    def run_layer(xp_ref, whh, h_out_ref):
        """Recurrence only: gates_t = xproj[t] + h_{t-1} @ W_hh."""
        h = jnp.zeros((B, H), jnp.float32)
        c = jnp.zeros((B, H), jnp.float32)
        # T is small and static -> full unroll with static, sublane-aligned slices.
        # TODO(synk): for T >~ 32 switch to lax.fori_loop(..., unroll=2-4) to bound
        # instruction count and vreg live ranges.
        for t in range(T):
            gates = xp_ref[pl.ds(t * B, B), :] + jnp.dot(
                h.astype(cdt), whh, preferred_element_type=jnp.float32)
            i, f, g, o = split_activate(gates)
            c = f * c + i * g
            h = o * jnp.tanh(c)
            h_out_ref[pl.ds(t * B, B), :] = h

    # NOTE: the recurrence below is recomputed for every vocab tile (grid step).
    # It is tiny next to the output projection at production sizes and keeps the
    # kernel correct when the "parallel" grid axis is split across TensorCores
    # (each core owns its own VMEM scratch).

    # ---- Layer 0: batched input projection, then recurrence ----------------
    xproj_ref[...] = jnp.dot(x_ref[...], wih0_ref[...],
                             preferred_element_type=jnp.float32) + b0_ref[...]
    run_layer(xproj_ref, whh0_ref[...], h1_all_ref)

    # ---- Layer 1: batched input projection from all h1, then recurrence ----
    # (nn.LSTM inter-layer dropout is a no-op in eval mode.)
    xproj_ref[...] = jnp.dot(h1_all_ref[...].astype(cdt), wih1_ref[...],
                             preferred_element_type=jnp.float32) + b1_ref[...]
    run_layer(xproj_ref, whh1_ref[...], h2_all_ref)

    # ---- Batched output projection against this grid step's vocab tile -----
    y = jnp.dot(h2_all_ref[...].astype(cdt), wout_ref[...],
                preferred_element_type=jnp.float32) + bout_ref[...]
    out_ref[...] = y.astype(out_ref.dtype)


def _round_up(n, m):
    return -(-n // m) * m


def decoder_rnn_forward(params, features, captions, *,
                        weight_dtype=jnp.float32, v_tile=512):
    """Equivalent of DecoderRNN.forward(features, captions) (eval mode)."""
    # --- glue (plain JAX): embedding gather + feature/embedding concat ------
    emb = params["embed"][captions[:, :-1]]                          # (B, T-1, E)
    inputs = jnp.concatenate([features[:, None, :], emb], axis=1)    # (B, T, E)
    x = jnp.transpose(inputs, (1, 0, 2)).astype(jnp.float32)         # (T, B, E)

    T, B, E = x.shape
    H = params["whh0"].shape[0]
    V = params["wout"].shape[1]

    B_pad = _round_up(B, 8)                                   # f32 sublane multiple
    TV = _round_up(min(v_tile, _round_up(V, 128)), 128)       # lane-dense vocab tile
    V_pad = _round_up(V, TV)
    n_v = V_pad // TV

    # Time-major flattened (row t*B_pad + b): every per-step slice in the kernel
    # is a contiguous, sublane-aligned block of B_pad rows.
    x2d = jnp.pad(x, ((0, 0), (0, B_pad - B), (0, 0))).reshape(T * B_pad, E)
    x2d = x2d.astype(weight_dtype)

    wih0 = params["wih0"].astype(weight_dtype)
    whh0 = params["whh0"].astype(weight_dtype)
    wih1 = params["wih1"].astype(weight_dtype)
    whh1 = params["whh1"].astype(weight_dtype)
    wout = jnp.pad(params["wout"], ((0, 0), (0, V_pad - V))).astype(weight_dtype)
    bout = jnp.pad(params["bout"], ((0, 0), (0, V_pad - V))).astype(jnp.float32)
    b0 = params["b0"].astype(jnp.float32)   # combined b_ih + b_hh
    b1 = params["b1"].astype(jnp.float32)

    # VMEM budget: resident inputs + double-buffered V tiles + scratch + headroom.
    wb = jnp.dtype(weight_dtype).itemsize
    vmem_bytes = (
        x2d.size * wb
        + (wih0.size + whh0.size + wih1.size + whh1.size) * wb
        + (b0.size + b1.size) * 4
        + 2 * (H * TV * wb + TV * 4)            # wout / bout tiles (double-buffered)
        + 2 * (T * B_pad * TV * 4)              # out tile (double-buffered)
        + T * B_pad * (4 * H + 2 * H) * 4       # VMEM scratch
    )
    vmem_limit = min(int(vmem_bytes) + (8 << 20), 64 << 20)

    kernel = functools.partial(_decoder_kernel, seq_len=T, batch=B_pad)

    out2d = pl.pallas_call(
        kernel,
        out_shape=jax.ShapeDtypeStruct((T * B_pad, V_pad), jnp.float32),
        grid_spec=pltpu.PrefetchScalarGridSpec(
            num_scalar_prefetch=0,
            grid=(n_v,),
            in_specs=[
                pl.BlockSpec((T * B_pad, E), lambda j: (0, 0)),   # x (VMEM-resident)
                pl.BlockSpec((E, 4 * H), lambda j: (0, 0)),       # wih0
                pl.BlockSpec((H, 4 * H), lambda j: (0, 0)),       # whh0
                pl.BlockSpec((1, 4 * H), lambda j: (0, 0)),       # b0
                pl.BlockSpec((H, 4 * H), lambda j: (0, 0)),       # wih1
                pl.BlockSpec((H, 4 * H), lambda j: (0, 0)),       # whh1
                pl.BlockSpec((1, 4 * H), lambda j: (0, 0)),       # b1
                pl.BlockSpec((H, TV), lambda j: (0, j)),          # wout tile (streamed)
                pl.BlockSpec((1, TV), lambda j: (0, j)),          # bout tile
            ],
            out_specs=pl.BlockSpec((T * B_pad, TV), lambda j: (0, j)),
            scratch_shapes=[
                pltpu.VMEM((T * B_pad, 4 * H), jnp.float32),  # x-projection (reused)
                pltpu.VMEM((T * B_pad, H), jnp.float32),      # all layer-0 h states
                pltpu.VMEM((T * B_pad, H), jnp.float32),      # all layer-1 h states
            ],
        ),
        compiler_params=pltpu.CompilerParams(
            dimension_semantics=("parallel",),
            vmem_limit_bytes=vmem_limit,
        ),
    )(x2d, wih0, whh0, b0, wih1, whh1, b1, wout, bout)

    # (T*B_pad, V_pad) -> batch_first (B, T, V), dropping batch/vocab padding.
    # TODO(synk): at production V this transpose costs an extra HBM round-trip of
    # the logits; emit batch-major directly from the kernel (strided sublane
    # stores) if it shows up in profiles.
    out = out2d.reshape(T, B_pad, V_pad)
    return jnp.transpose(out, (1, 0, 2))[:B, :, :V]


def decoder_rnn_reference(params, features, captions):
    """Pure-JAX reference for correctness checking (unfused math)."""
    emb = params["embed"][captions[:, :-1]]
    inputs = jnp.concatenate([features[:, None, :], emb], axis=1).astype(jnp.float32)
    B, T, E = inputs.shape
    H = params["whh0"].shape[0]

    def cell(x_in, h, c, wih, whh, b):
        gates = x_in @ wih + h @ whh + b
        i = jax.nn.sigmoid(gates[:, 0 * H:1 * H])
        f = jax.nn.sigmoid(gates[:, 1 * H:2 * H])
        g = jnp.tanh(gates[:, 2 * H:3 * H])
        o = jax.nn.sigmoid(gates[:, 3 * H:4 * H])
        c_new = f * c + i * g
        h_new = o * jnp.tanh(c_new)
        return h_new, c_new

    def step(carry, x_t):
        h1, c1, h2, c2 = carry
        h1, c1 = cell(x_t, h1, c1, params["wih0"], params["whh0"], params["b0"])
        h2, c2 = cell(h1, h2, c2, params["wih1"], params["whh1"], params["b1"])
        y = h2 @ params["wout"] + params["bout"]
        return (h1, c1, h2, c2), y

    zeros = jnp.zeros((B, H), jnp.float32)
    _, ys = lax.scan(step, (zeros, zeros, zeros, zeros),
                     jnp.transpose(inputs, (1, 0, 2)))
    return jnp.transpose(ys, (1, 0, 2))


def init_params(key, embed_size, hidden_size, vocab_size):
    ks = jax.random.split(key, 9)
    s = 0.1
    return {
        "embed": s * jax.random.normal(ks[0], (vocab_size, embed_size), jnp.float32),
        # LSTM layer 0 (weights stored transposed: (in, 4H), gate order i,f,g,o)
        "wih0": s * jax.random.normal(ks[1], (embed_size, 4 * hidden_size), jnp.float32),
        "whh0": s * jax.random.normal(ks[2], (hidden_size, 4 * hidden_size), jnp.float32),
        "b0":   s * jax.random.normal(ks[3], (1, 4 * hidden_size), jnp.float32),
        # LSTM layer 1
        "wih1": s * jax.random.normal(ks[4], (hidden_size, 4 * hidden_size), jnp.float32),
        "whh1": s * jax.random.normal(ks[5], (hidden_size, 4 * hidden_size), jnp.float32),
        "b1":   s * jax.random.normal(ks[6], (1, 4 * hidden_size), jnp.float32),
        # Output linear: (H, V) + (1, V)
        "wout": s * jax.random.normal(ks[7], (hidden_size, vocab_size), jnp.float32),
        "bout": s * jax.random.normal(ks[8], (1, vocab_size), jnp.float32),
    }


if __name__ == "__main__":
    B, E, H, V = 2, 32, 32, 300   # V=300 -> V_pad=384, 3 vocab tiles at v_tile=128
    CAP_LEN = 8                   # kernel sequence length T = 1 (features) + 7 = 8

    key = jax.random.PRNGKey(0)
    k_params, k_feat, k_cap = jax.random.split(key, 3)

    params = init_params(k_params, E, H, V)
    features = jax.random.normal(k_feat, (B, E), jnp.float32)
    captions = jax.random.randint(k_cap, (B, CAP_LEN), 0, V, jnp.int32)

    ref = decoder_rnn_reference(params, features, captions)

    # f32 weights: exact-path check (exercises the multi-tile vocab grid).
    out_f32 = decoder_rnn_forward(params, features, captions,
                                  weight_dtype=jnp.float32, v_tile=128)
    out_f32 = jax.block_until_ready(out_f32)
    np.testing.assert_allclose(np.asarray(out_f32), np.asarray(ref),
                               atol=1e-5, rtol=1e-5)

    # bf16 weights/inputs (f32 accumulation & gate math): looser tolerance is the
    # expected precision loss, not a bug.
    out_bf16 = decoder_rnn_forward(params, features, captions,
                                   weight_dtype=jnp.bfloat16, v_tile=128)
    out_bf16 = jax.block_until_ready(out_bf16)
    np.testing.assert_allclose(np.asarray(out_bf16), np.asarray(ref),
                               atol=5e-2, rtol=5e-2)

    assert out_f32.shape == (B, CAP_LEN, V)
    print("KERNEL_OK")
</pallas_src>

<mosaic_0001>
module attributes {stable_mosaic.version = 11 : i64} {
  func.func @_decoder_kernel(%arg0: i32, %arg1: memref<64x32xf32, #tpu.memory_space<vmem>>, %arg2: memref<32x128xf32, #tpu.memory_space<vmem>>, %arg3: memref<32x128xf32, #tpu.memory_space<vmem>>, %arg4: memref<1x128xf32, #tpu.memory_space<vmem>>, %arg5: memref<32x128xf32, #tpu.memory_space<vmem>>, %arg6: memref<32x128xf32, #tpu.memory_space<vmem>>, %arg7: memref<1x128xf32, #tpu.memory_space<vmem>>, %arg8: memref<32x128xf32, #tpu.memory_space<vmem>>, %arg9: memref<1x128xf32, #tpu.memory_space<vmem>>, %arg10: memref<64x128xf32, #tpu.memory_space<vmem>>, %arg11: memref<64x128xf32, #tpu.memory_space<vmem>>, %arg12: memref<64x32xf32, #tpu.memory_space<vmem>>, %arg13: memref<64x32xf32, #tpu.memory_space<vmem>>) attributes {dimension_semantics = [#tpu.dimension_semantics<parallel>], iteration_bounds = array<i64: 3>, scalar_prefetch = 0 : i64, scratch_operands = 3 : i64, tpu.core_type = #tpu.core_type<tc>, window_params = [{pipeline_mode = #tpu.pipeline_mode<synchronous>, transform_indices = @transform_0, window_bounds = array<i64: 64, 32>}, {pipeline_mode = #tpu.pipeline_mode<synchronous>, transform_indices = @transform_1, window_bounds = array<i64: 32, 128>}, {pipeline_mode = #tpu.pipeline_mode<synchronous>, transform_indices = @transform_2, window_bounds = array<i64: 32, 128>}, {pipeline_mode = #tpu.pipeline_mode<synchronous>, transform_indices = @transform_3, window_bounds = array<i64: 1, 128>}, {pipeline_mode = #tpu.pipeline_mode<synchronous>, transform_indices = @transform_4, window_bounds = array<i64: 32, 128>}, {pipeline_mode = #tpu.pipeline_mode<synchronous>, transform_indices = @transform_5, window_bounds = array<i64: 32, 128>}, {pipeline_mode = #tpu.pipeline_mode<synchronous>, transform_indices = @transform_6, window_bounds = array<i64: 1, 128>}, {transform_indices = @transform_7, window_bounds = array<i64: 32, 128>}, {transform_indices = @transform_8, window_bounds = array<i64: 1, 128>}, {transform_indices = @transform_9, window_bounds = array<i64: 64, 128>}]} {
    %0 = tpu.iota {dimensions = array<i32: 1>} : vector<8x128xi32>
    %c64_i32 = arith.constant 64 : i32
    %1 = vector.broadcast %c64_i32 : i32 to vector<8x128xi32>
    %2 = arith.cmpi sge, %0, %1 : vector<8x128xi32>
    %c96_i32 = arith.constant 96 : i32
    %3 = vector.broadcast %c96_i32 : i32 to vector<8x128xi32>
    %4 = arith.cmpi slt, %0, %3 : vector<8x128xi32>
    %5 = arith.andi %2, %4 : vector<8x128xi1>
    %c0 = arith.constant 0 : index
    %c0_0 = arith.constant 0 : index
    %6 = vector.load %arg1[%c0, %c0_0] : memref<64x32xf32, #tpu.memory_space<vmem>>, vector<64x32xf32>
    %c0_1 = arith.constant 0 : index
    %c0_2 = arith.constant 0 : index
    %7 = vector.load %arg2[%c0_1, %c0_2] : memref<32x128xf32, #tpu.memory_space<vmem>>, vector<32x128xf32>
    %cst = arith.constant dense<0.000000e+00> : vector<64x128xf32>
    %8 = tpu.matmul %6, %7, %cst {dimension_numbers = #tpu.dot_dimension_numbers<[1], [0], [0], [1], [0, 0, 1, 1], [], []>} : vector<64x32xf32>, vector<32x128xf32>, vector<64x128xf32> -> vector<64x128xf32>
    %c0_3 = arith.constant 0 : index
    %c0_4 = arith.constant 0 : index
    %9 = vector.load %arg4[%c0_3, %c0_4] : memref<1x128xf32, #tpu.memory_space<vmem>>, vector<1x128xf32>
    %10 = vector.broadcast %9 : vector<1x128xf32> to vector<64x128xf32>
    %11 = arith.addf %8, %10 : vector<64x128xf32>
    %c0_5 = arith.constant 0 : index
    %c0_6 = arith.constant 0 : index
    %12 = vector.load %arg11[%c0_5, %c0_6] : memref<64x128xf32, #tpu.memory_space<vmem>>, vector<64x128xf32>
    tpu.vector_store %arg11[%c0_5, %c0_6], %11 {strides = array<i32>} : memref<64x128xf32, #tpu.memory_space<vmem>>, vector<64x128xf32>,
    %c0_7 = arith.constant 0 : index
    %c0_8 = arith.constant 0 : index
    %13 = vector.load %arg3[%c0_7, %c0_8] : memref<32x128xf32, #tpu.memory_space<vmem>>, vector<32x128xf32>
    %cst_9 = arith.constant 0.000000e+00 : f32
    %14 = vector.broadcast %cst_9 : f32 to vector<8x32xf32>
    %cst_10 = arith.constant 0.000000e+00 : f32
    %15 = vector.broadcast %cst_10 : f32 to vector<8x32xf32>
    %c0_11 = arith.constant 0 : index
    %c0_12 = arith.constant 0 : index
    %16 = vector.load %arg11[%c0_11, %c0_12] : memref<64x128xf32, #tpu.memory_space<vmem>>, vector<8x128xf32>
    %cst_13 = arith.constant dense<0.000000e+00> : vector<8x128xf32>
    %17 = tpu.matmul %14, %13, %cst_13 {dimension_numbers = #tpu.dot_dimension_numbers<[1], [0], [0], [1], [0, 0, 1, 1], [], []>} : vector<8x32xf32>, vector<32x128xf32>, vector<8x128xf32> -> vector<8x128xf32>
    %18 = arith.addf %16, %17 : vector<8x128xf32>
    %19 = math.tanh %18 : vector<8x128xf32>
    %20 = arith.negf %18 : vector<8x128xf32>
    %21 = math.exp %20 : vector<8x128xf32>
    %cst_14 = arith.constant 1.000000e+00 : f32
    %22 = vector.broadcast %cst_14 : f32 to vector<8x128xf32>
    %23 = arith.addf %22, %21 : vector<8x128xf32>
    %24 = arith.divf %22, %23 : vector<8x128xf32>
    %25 = arith.select %5, %19, %24 : vector<8x128xi1>, vector<8x128xf32>
    %26 = vector.extract_strided_slice %25 {offsets = [0, 0], sizes = [8, 32], strides = [1, 1]} : vector<8x128xf32> to vector<8x32xf32>
    %27 = vector.extract_strided_slice %25 {offsets = [0, 32], sizes = [8, 32], strides = [1, 1]} : vector<8x128xf32> to vector<8x32xf32>
    %28 = vector.extract_strided_slice %25 {offsets = [0, 64], sizes = [8, 32], strides = [1, 1]} : vector<8x128xf32> to vector<8x32xf32>
    %29 = vector.extract_strided_slice %25 {offsets = [0, 96], sizes = [8, 32], strides = [1, 1]} : vector<8x128xf32> to vector<8x32xf32>
    %30 = arith.mulf %27, %15 : vector<8x32xf32>
    %31 = arith.mulf %26, %28 : vector<8x32xf32>
    %32 = arith.addf %30, %31 : vector<8x32xf32>
    %33 = math.tanh %32 : vector<8x32xf32>
    %34 = arith.mulf %29, %33 : vector<8x32xf32>
    %c0_15 = arith.constant 0 : index
    %c0_16 = arith.constant 0 : index
    %35 = vector.load %arg12[%c0_15, %c0_16] : memref<64x32xf32, #tpu.memory_space<vmem>>, vector<8x32xf32>
    tpu.vector_store %arg12[%c0_15, %c0_16], %34 {strides = array<i32>} : memref<64x32xf32, #tpu.memory_space<vmem>>, vector<8x32xf32>,
    %c8 = arith.constant 8 : index
    %c0_17 = arith.constant 0 : index
    %36 = vector.load %arg11[%c8, %c0_17] : memref<64x128xf32, #tpu.memory_space<vmem>>, vector<8x128xf32>
    %cst_18 = arith.constant dense<0.000000e+00> : vector<8x128xf32>
    %37 = tpu.matmul %34, %13, %cst_18 {dimension_numbers = #tpu.dot_dimension_numbers<[1], [0], [0], [1], [0, 0, 1, 1], [], []>} : vector<8x32xf32>, vector<32x128xf32>, vector<8x128xf32> -> vector<8x128xf32>
    %38 = arith.addf %36, %37 : vector<8x128xf32>
    %39 = math.tanh %38 : vector<8x128xf32>
    %40 = arith.negf %38 : vector<8x128xf32>
    %41 = math.exp %40 : vector<8x128xf32>
    %cst_19 = arith.constant 1.000000e+00 : f32
    %42 = vector.broadcast %cst_19 : f32 to vector<8x128xf32>
    %43 = arith.addf %42, %41 : vector<8x128xf32>
    %44 = arith.divf %42, %43 : vector<8x128xf32>
    %45 = arith.select %5, %39, %44 : vector<8x128xi1>, vector<8x128xf32>
    %46 = vector.extract_strided_slice %45 {offsets = [0, 0], sizes = [8, 32], strides = [1, 1]} : vector<8x128xf32> to vector<8x32xf32>
    %47 = vector.extract_strided_slice %45 {offsets = [0, 32], sizes = [8, 32], strides = [1, 1]} : vector<8x128xf32> to vector<8x32xf32>
    %48 = vector.extract_strided_slice %45 {offsets = [0, 64], sizes = [8, 32], strides = [1, 1]} : vector<8x128xf32> to vector<8x32xf32>
    %49 = vector.extract_strided_slice %45 {offsets = [0, 96], sizes = [8, 32], strides = [1, 1]} : vector<8x128xf32> to vector<8x32xf32>
    %50 = arith.mulf %47, %32 : vector<8x32xf32>
    %51 = arith.mulf %46, %48 : vector<8x32xf32>
    %52 = arith.addf %50, %51 : vector<8x32xf32>
    %53 = math.tanh %52 : vector<8x32xf32>
    %54 = arith.mulf %49, %53 : vector<8x32xf32>
    %c8_20 = arith.constant 8 : index
    %c0_21 = arith.constant 0 : index
    %55 = vector.load %arg12[%c8_20, %c0_21] : memref<64x32xf32, #tpu.memory_space<vmem>>, vector<8x32xf32>
    tpu.vector_store %arg12[%c8_20, %c0_21], %54 {strides = array<i32>} : memref<64x32xf32, #tpu.memory_space<vmem>>, vector<8x32xf32>,
    %c16 = arith.constant 16 : index
    %c0_22 = arith.constant 0 : index
    %56 = vector.load %arg11[%c16, %c0_22] : memref<64x128xf32, #tpu.memory_space<vmem>>, vector<8x128xf32>
    %cst_23 = arith.constant dense<0.000000e+00> : vector<8x128xf32>
    %57 = tpu.matmul %54, %13, %cst_23 {dimension_numbers = #tpu.dot_dimension_numbers<[1], [0], [0], [1], [0, 0, 1, 1], [], []>} : vector<8x32xf32>, vector<32x128xf32>, vector<8x128xf32> -> vector<8x128xf32>
    %58 = arith.addf %56, %57 : vector<8x128xf32>
    %59 = math.tanh %58 : vector<8x128xf32>
    %60 = arith.negf %58 : vector<8x128xf32>
    %61 = math.exp %60 : vector<8x128xf32>
    %cst_24 = arith.constant 1.000000e+00 : f32
    %62 = vector.broadcast %cst_24 : f32 to vector<8x128xf32>
    %63 = arith.addf %62, %61 : vector<8x128xf32>
    %64 = arith.divf %62, %63 : vector<8x128xf32>
    %65 = arith.select %5, %59, %64 : vector<8x128xi1>, vector<8x128xf32>
    %66 = vector.extract_strided_slice %65 {offsets = [0, 0], sizes = [8, 32], strides = [1, 1]} : vector<8x128xf32> to vector<8x32xf32>
    %67 = vector.extract_strided_slice %65 {offsets = [0, 32], sizes = [8, 32], strides = [1, 1]} : vector<8x128xf32> to vector<8x32xf32>
    %68 = vector.extract_strided_slice %65 {offsets = [0, 64], sizes = [8, 32], strides = [1, 1]} : vector<8x128xf32> to vector<8x32xf32>
    %69 = vector.extract_strided_slice %65 {offsets = [0, 96], sizes = [8, 32], strides = [1, 1]} : vector<8x128xf32> to vector<8x32xf32>
    %70 = arith.mulf %67, %52 : vector<8x32xf32>
    %71 = arith.mulf %66, %68 : vector<8x32xf32>
    %72 = arith.addf %70, %71 : vector<8x32xf32>
    %73 = math.tanh %72 : vector<8x32xf32>
    %74 = arith.mulf %69, %73 : vector<8x32xf32>
    %c16_25 = arith.constant 16 : index
    %c0_26 = arith.constant 0 : index
    %75 = vector.load %arg12[%c16_25, %c0_26] : memref<64x32xf32, #tpu.memory_space<vmem>>, vector<8x32xf32>
    tpu.vector_store %arg12[%c16_25, %c0_26], %74 {strides = array<i32>} : memref<64x32xf32, #tpu.memory_space<vmem>>, vector<8x32xf32>,
    %c24 = arith.constant 24 : index
    %c0_27 = arith.constant 0 : index
    %76 = vector.load %arg11[%c24, %c0_27] : memref<64x128xf32, #tpu.memory_space<vmem>>, vector<8x128xf32>
    %cst_28 = arith.constant dense<0.000000e+00> : vector<8x128xf32>
    %77 = tpu.matmul %74, %13, %cst_28 {dimension_numbers = #tpu.dot_dimension_numbers<[1], [0], [0], [1], [0, 0, 1, 1], [], []>} : vector<8x32xf32>, vector<32x128xf32>, vector<8x128xf32> -> vector<8x128xf32>
    %78 = arith.addf %76, %77 : vector<8x128xf32>
    %79 = math.tanh %78 : vector<8x128xf32>
    %80 = arith.negf %78 : vector<8x128xf32>
    %81 = math.exp %80 : vector<8x128xf32>
    %cst_29 = arith.constant 1.000000e+00 : f32
    %82 = vector.broadcast %cst_29 : f32 to vector<8x128xf32>
    %83 = arith.addf %82, %81 : vector<8x128xf32>
    %84 = arith.divf %82, %83 : vector<8x128xf32>
    %85 = arith.select %5, %79, %84 : vector<8x128xi1>, vector<8x128xf32>
    %86 = vector.extract_strided_slice %85 {offsets = [0, 0], sizes = [8, 32], strides = [1, 1]} : vector<8x128xf32> to vector<8x32xf32>
    %87 = vector.extract_strided_slice %85 {offsets = [0, 32], sizes = [8, 32], strides = [1, 1]} : vector<8x128xf32> to vector<8x32xf32>
    %88 = vector.extract_strided_slice %85 {offsets = [0, 64], sizes = [8, 32], strides = [1, 1]} : vector<8x128xf32> to vector<8x32xf32>
    %89 = vector.extract_strided_slice %85 {offsets = [0, 96], sizes = [8, 32], strides = [1, 1]} : vector<8x128xf32> to vector<8x32xf32>
    %90 = arith.mulf %87, %72 : vector<8x32xf32>
    %91 = arith.mulf %86, %88 : vector<8x32xf32>
    %92 = arith.addf %90, %91 : vector<8x32xf32>
    %93 = math.tanh %92 : vector<8x32xf32>
    %94 = arith.mulf %89, %93 : vector<8x32xf32>
    %c24_30 = arith.constant 24 : index
    %c0_31 = arith.constant 0 : index
    %95 = vector.load %arg12[%c24_30, %c0_31] : memref<64x32xf32, #tpu.memory_space<vmem>>, vector<8x32xf32>
    tpu.vector_store %arg12[%c24_30, %c0_31], %94 {strides = array<i32>} : memref<64x32xf32, #tpu.memory_space<vmem>>, vector<8x32xf32>,
    %c32 = arith.constant 32 : index
    %c0_32 = arith.constant 0 : index
    %96 = vector.load %arg11[%c32, %c0_32] : memref<64x128xf32, #tpu.memory_space<vmem>>, vector<8x128xf32>
    %cst_33 = arith.constant dense<0.000000e+00> : vector<8x128xf32>
    %97 = tpu.matmul %94, %13, %cst_33 {dimension_numbers = #tpu.dot_dimension_numbers<[1], [0], [0], [1], [0, 0, 1, 1], [], []>} : vector<8x32xf32>, vector<32x128xf32>, vector<8x128xf32> -> vector<8x128xf32>
    %98 = arith.addf %96, %97 : vector<8x128xf32>
    %99 = math.tanh %98 : vector<8x128xf32>
    %100 = arith.negf %98 : vector<8x128xf32>
    %101 = math.exp %100 : vector<8x128xf32>
    %cst_34 = arith.constant 1.000000e+00 : f32
    %102 = vector.broadcast %cst_34 : f32 to vector<8x128xf32>
    %103 = arith.addf %102, %101 : vector<8x128xf32>
    %104 = arith.divf %102, %103 : vector<8x128xf32>
    %105 = arith.select %5, %99, %104 : vector<8x128xi1>, vector<8x128xf32>
    %106 = vector.extract_strided_slice %105 {offsets = [0, 0], sizes = [8, 32], strides = [1, 1]} : vector<8x128xf32> to vector<8x32xf32>
    %107 = vector.extract_strided_slice %105 {offsets = [0, 32], sizes = [8, 32], strides = [1, 1]} : vector<8x128xf32> to vector<8x32xf32>
    %108 = vector.extract_strided_slice %105 {offsets = [0, 64], sizes = [8, 32], strides = [1, 1]} : vector<8x128xf32> to vector<8x32xf32>
    %109 = vector.extract_strided_slice %105 {offsets = [0, 96], sizes = [8, 32], strides = [1, 1]} : vector<8x128xf32> to vector<8x32xf32>
    %110 = arith.mulf %107, %92 : vector<8x32xf32>
    %111 = arith.mulf %106, %108 : vector<8x32xf32>
    %112 = arith.addf %110, %111 : vector<8x32xf32>
    %113 = math.tanh %112 : vector<8x32xf32>
    %114 = arith.mulf %109, %113 : vector<8x32xf32>
    %c32_35 = arith.constant 32 : index
    %c0_36 = arith.constant 0 : index
    %115 = vector.load %arg12[%c32_35, %c0_36] : memref<64x32xf32, #tpu.memory_space<vmem>>, vector<8x32xf32>
    tpu.vector_store %arg12[%c32_35, %c0_36], %114 {strides = array<i32>} : memref<64x32xf32, #tpu.memory_space<vmem>>, vector<8x32xf32>,
    %c40 = arith.constant 40 : index
    %c0_37 = arith.constant 0 : index
    %116 = vector.load %arg11[%c40, %c0_37] : memref<64x128xf32, #tpu.memory_space<vmem>>, vector<8x128xf32>
    %cst_38 = arith.constant dense<0.000000e+00> : vector<8x128xf32>
    %117 = tpu.matmul %114, %13, %cst_38 {dimension_numbers = #tpu.dot_dimension_numbers<[1], [0], [0], [1], [0, 0, 1, 1], [], []>} : vector<8x32xf32>, vector<32x128xf32>, vector<8x128xf32> -> vector<8x128xf32>
    %118 = arith.addf %116, %117 : vector<8x128xf32>
    %119 = math.tanh %118 : vector<8x128xf32>
    %120 = arith.negf %118 : vector<8x128xf32>
    %121 = math.exp %120 : vector<8x128xf32>
    %cst_39 = arith.constant 1.000000e+00 : f32
    %122 = vector.broadcast %cst_39 : f32 to vector<8x128xf32>
    %123 = arith.addf %122, %121 : vector<8x128xf32>
    %124 = arith.divf %122, %123 : vector<8x128xf32>
    %125 = arith.select %5, %119, %124 : vector<8x128xi1>, vector<8x128xf32>
    %126 = vector.extract_strided_slice %125 {offsets = [0, 0], sizes = [8, 32], strides = [1, 1]} : vector<8x128xf32> to vector<8x32xf32>
    %127 = vector.extract_strided_slice %125 {offsets = [0, 32], sizes = [8, 32], strides = [1, 1]} : vector<8x128xf32> to vector<8x32xf32>
    %128 = vector.extract_strided_slice %125 {offsets = [0, 64], sizes = [8, 32], strides = [1, 1]} : vector<8x128xf32> to vector<8x32xf32>
    %129 = vector.extract_strided_slice %125 {offsets = [0, 96], sizes = [8, 32], strides = [1, 1]} : vector<8x128xf32> to vector<8x32xf32>
    %130 = arith.mulf %127, %112 : vector<8x32xf32>
    %131 = arith.mulf %126, %128 : vector<8x32xf32>
    %132 = arith.addf %130, %131 : vector<8x32xf32>
    %133 = math.tanh %132 : vector<8x32xf32>
    %134 = arith.mulf %129, %133 : vector<8x32xf32>
    %c40_40 = arith.constant 40 : index
    %c0_41 = arith.constant 0 : index
    %135 = vector.load %arg12[%c40_40, %c0_41] : memref<64x32xf32, #tpu.memory_space<vmem>>, vector<8x32xf32>
    tpu.vector_store %arg12[%c40_40, %c0_41], %134 {strides = array<i32>} : memref<64x32xf32, #tpu.memory_space<vmem>>, vector<8x32xf32>,
    %c48 = arith.constant 48 : index
    %c0_42 = arith.constant 0 : index
    %136 = vector.load %arg11[%c48, %c0_42] : memref<64x128xf32, #tpu.memory_space<vmem>>, vector<8x128xf32>
    %cst_43 = arith.constant dense<0.000000e+00> : vector<8x128xf32>
    %137 = tpu.matmul %134, %13, %cst_43 {dimension_numbers = #tpu.dot_dimension_numbers<[1], [0], [0], [1], [0, 0, 1, 1], [], []>} : vector<8x32xf32>, vector<32x128xf32>, vector<8x128xf32> -> vector<8x128xf32>
    %138 = arith.addf %136, %137 : vector<8x128xf32>
    %139 = math.tanh %138 : vector<8x128xf32>
    %140 = arith.negf %138 : vector<8x128xf32>
    %141 = math.exp %140 : vector<8x128xf32>
    %cst_44 = arith.constant 1.000000e+00 : f32
    %142 = vector.broadcast %cst_44 : f32 to vector<8x128xf32>
    %143 = arith.addf %142, %141 : vector<8x128xf32>
    %144 = arith.divf %142, %143 : vector<8x128xf32>
    %145 = arith.select %5, %139, %144 : vector<8x128xi1>, vector<8x128xf32>
    %146 = vector.extract_strided_slice %145 {offsets = [0, 0], sizes = [8, 32], strides = [1, 1]} : vector<8x128xf32> to vector<8x32xf32>
    %147 = vector.extract_strided_slice %145 {offsets = [0, 32], sizes = [8, 32], strides = [1, 1]} : vector<8x128xf32> to vector<8x32xf32>
    %148 = vector.extract_strided_slice %145 {offsets = [0, 64], sizes = [8, 32], strides = [1, 1]} : vector<8x128xf32> to vector<8x32xf32>
    %149 = vector.extract_strided_slice %145 {offsets = [0, 96], sizes = [8, 32], strides = [1, 1]} : vector<8x128xf32> to vector<8x32xf32>
    %150 = arith.mulf %147, %132 : vector<8x32xf32>
    %151 = arith.mulf %146, %148 : vector<8x32xf32>
    %152 = arith.addf %150, %151 : vector<8x32xf32>
    %153 = math.tanh %152 : vector<8x32xf32>
    %154 = arith.mulf %149, %153 : vector<8x32xf32>
    %c48_45 = arith.constant 48 : index
    %c0_46 = arith.constant 0 : index
    %155 = vector.load %arg12[%c48_45, %c0_46] : memref<64x32xf32, #tpu.memory_space<vmem>>, vector<8x32xf32>
    tpu.vector_store %arg12[%c48_45, %c0_46], %154 {strides = array<i32>} : memref<64x32xf32, #tpu.memory_space<vmem>>, vector<8x32xf32>,
    %c56 = arith.constant 56 : index
    %c0_47 = arith.constant 0 : index
    %156 = vector.load %arg11[%c56, %c0_47] : memref<64x128xf32, #tpu.memory_space<vmem>>, vector<8x128xf32>
    %cst_48 = arith.constant dense<0.000000e+00> : vector<8x128xf32>
    %157 = tpu.matmul %154, %13, %cst_48 {dimension_numbers = #tpu.dot_dimension_numbers<[1], [0], [0], [1], [0, 0, 1, 1], [], []>} : vector<8x32xf32>, vector<32x128xf32>, vector<8x128xf32> -> vector<8x128xf32>
    %158 = arith.addf %156, %157 : vector<8x128xf32>
    %159 = math.tanh %158 : vector<8x128xf32>
    %160 = arith.negf %158 : vector<8x128xf32>
    %161 = math.exp %160 : vector<8x128xf32>
    %cst_49 = arith.constant 1.000000e+00 : f32
    %162 = vector.broadcast %cst_49 : f32 to vector<8x128xf32>
    %163 = arith.addf %162, %161 : vector<8x128xf32>
    %164 = arith.divf %162, %163 : vector<8x128xf32>
    %165 = arith.select %5, %159, %164 : vector<8x128xi1>, vector<8x128xf32>
    %166 = vector.extract_strided_slice %165 {offsets = [0, 0], sizes = [8, 32], strides = [1, 1]} : vector<8x128xf32> to vector<8x32xf32>
    %167 = vector.extract_strided_slice %165 {offsets = [0, 32], sizes = [8, 32], strides = [1, 1]} : vector<8x128xf32> to vector<8x32xf32>
    %168 = vector.extract_strided_slice %165 {offsets = [0, 64], sizes = [8, 32], strides = [1, 1]} : vector<8x128xf32> to vector<8x32xf32>
    %169 = vector.extract_strided_slice %165 {offsets = [0, 96], sizes = [8, 32], strides = [1, 1]} : vector<8x128xf32> to vector<8x32xf32>
    %170 = arith.mulf %167, %152 : vector<8x32xf32>
    %171 = arith.mulf %166, %168 : vector<8x32xf32>
    %172 = arith.addf %170, %171 : vector<8x32xf32>
    %173 = math.tanh %172 : vector<8x32xf32>
    %174 = arith.mulf %169, %173 : vector<8x32xf32>
    %c56_50 = arith.constant 56 : index
    %c0_51 = arith.constant 0 : index
    %175 = vector.load %arg12[%c56_50, %c0_51] : memref<64x32xf32, #tpu.memory_space<vmem>>, vector<8x32xf32>
    tpu.vector_store %arg12[%c56_50, %c0_51], %174 {strides = array<i32>} : memref<64x32xf32, #tpu.memory_space<vmem>>, vector<8x32xf32>,
    %c0_52 = arith.constant 0 : index
    %c0_53 = arith.constant 0 : index
    %176 = vector.load %arg12[%c0_52, %c0_53] : memref<64x32xf32, #tpu.memory_space<vmem>>, vector<64x32xf32>
    %c0_54 = arith.constant 0 : index
    %c0_55 = arith.constant 0 : index
    %177 = vector.load %arg5[%c0_54, %c0_55] : memref<32x128xf32, #tpu.memory_space<vmem>>, vector<32x128xf32>
    %cst_56 = arith.constant dense<0.000000e+00> : vector<64x128xf32>
    %178 = tpu.matmul %176, %177, %cst_56 {dimension_numbers = #tpu.dot_dimension_numbers<[1], [0], [0], [1], [0, 0, 1, 1], [], []>} : vector<64x32xf32>, vector<32x128xf32>, vector<64x128xf32> -> vector<64x128xf32>
    %c0_57 = arith.constant 0 : index
    %c0_58 = arith.constant 0 : index
    %179 = vector.load %arg7[%c0_57, %c0_58] : memref<1x128xf32, #tpu.memory_space<vmem>>, vector<1x128xf32>
    %180 = vector.broadcast %179 : vector<1x128xf32> to vector<64x128xf32>
    %181 = arith.addf %178, %180 : vector<64x128xf32>
    %c0_59 = arith.constant 0 : index
    %c0_60 = arith.constant 0 : index
    %182 = vector.load %arg11[%c0_59, %c0_60] : memref<64x128xf32, #tpu.memory_space<vmem>>, vector<64x128xf32>
    tpu.vector_store %arg11[%c0_59, %c0_60], %181 {strides = array<i32>} : memref<64x128xf32, #tpu.memory_space<vmem>>, vector<64x128xf32>,
    %c0_61 = arith.constant 0 : index
    %c0_62 = arith.constant 0 : index
    %183 = vector.load %arg6[%c0_61, %c0_62] : memref<32x128xf32, #tpu.memory_space<vmem>>, vector<32x128xf32>
    %cst_63 = arith.constant 0.000000e+00 : f32
    %184 = vector.broadcast %cst_63 : f32 to vector<8x32xf32>
    %cst_64 = arith.constant 0.000000e+00 : f32
    %185 = vector.broadcast %cst_64 : f32 to vector<8x32xf32>
    %c0_65 = arith.constant 0 : index
    %c0_66 = arith.constant 0 : index
    %186 = vector.load %arg11[%c0_65, %c0_66] : memref<64x128xf32, #tpu.memory_space<vmem>>, vector<8x128xf32>
    %cst_67 = arith.constant dense<0.000000e+00> : vector<8x128xf32>
    %187 = tpu.matmul %184, %183, %cst_67 {dimension_numbers = #tpu.dot_dimension_numbers<[1], [0], [0], [1], [0, 0, 1, 1], [], []>} : vector<8x32xf32>, vector<32x128xf32>, vector<8x128xf32> -> vector<8x128xf32>
    %188 = arith.addf %186, %187 : vector<8x128xf32>
    %189 = math.tanh %188 : vector<8x128xf32>
    %190 = arith.negf %188 : vector<8x128xf32>
    %191 = math.exp %190 : vector<8x128xf32>
    %cst_68 = arith.constant 1.000000e+00 : f32
    %192 = vector.broadcast %cst_68 : f32 to vector<8x128xf32>
    %193 = arith.addf %192, %191 : vector<8x128xf32>
    %194 = arith.divf %192, %193 : vector<8x128xf32>
    %195 = arith.select %5, %189, %194 : vector<8x128xi1>, vector<8x128xf32>
    %196 = vector.extract_strided_slice %195 {offsets = [0, 0], sizes = [8, 32], strides = [1, 1]} : vector<8x128xf32> to vector<8x32xf32>
    %197 = vector.extract_strided_slice %195 {offsets = [0, 32], sizes = [8, 32], strides = [1, 1]} : vector<8x128xf32> to vector<8x32xf32>
    %198 = vector.extract_strided_slice %195 {offsets = [0, 64], sizes = [8, 32], strides = [1, 1]} : vector<8x128xf32> to vector<8x32xf32>
    %199 = vector.extract_strided_slice %195 {offsets = [0, 96], sizes = [8, 32], strides = [1, 1]} : vector<8x128xf32> to vector<8x32xf32>
    %200 = arith.mulf %197, %185 : vector<8x32xf32>
    %201 = arith.mulf %196, %198 : vector<8x32xf32>
    %202 = arith.addf %200, %201 : vector<8x32xf32>
    %203 = math.tanh %202 : vector<8x32xf32>
    %204 = arith.mulf %199, %203 : vector<8x32xf32>
    %c0_69 = arith.constant 0 : index
    %c0_70 = arith.constant 0 : index
    %205 = vector.load %arg13[%c0_69, %c0_70] : memref<64x32xf32, #tpu.memory_space<vmem>>, vector<8x32xf32>
    tpu.vector_store %arg13[%c0_69, %c0_70], %204 {strides = array<i32>} : memref<64x32xf32, #tpu.memory_space<vmem>>, vector<8x32xf32>,
    %c8_71 = arith.constant 8 : index
    %c0_72 = arith.constant 0 : index
    %206 = vector.load %arg11[%c8_71, %c0_72] : memref<64x128xf32, #tpu.memory_space<vmem>>, vector<8x128xf32>
    %cst_73 = arith.constant dense<0.000000e+00> : vector<8x128xf32>
    %207 = tpu.matmul %204, %183, %cst_73 {dimension_numbers = #tpu.dot_dimension_numbers<[1], [0], [0], [1], [0, 0, 1, 1], [], []>} : vector<8x32xf32>, vector<32x128xf32>, vector<8x128xf32> -> vector<8x128xf32>
    %208 = arith.addf %206, %207 : vector<8x128xf32>
    %209 = math.tanh %208 : vector<8x128xf32>
    %210 = arith.negf %208 : vector<8x128xf32>
    %211 = math.exp %210 : vector<8x128xf32>
    %cst_74 = arith.constant 1.000000e+00 : f32
    %212 = vector.broadcast %cst_74 : f32 to vector<8x128xf32>
    %213 = arith.addf %212, %211 : vector<8x128xf32>
    %214 = arith.divf %212, %213 : vector<8x128xf32>
    %215 = arith.select %5, %209, %214 : vector<8x128xi1>, vector<8x128xf32>
    %216 = vector.extract_strided_slice %215 {offsets = [0, 0], sizes = [8, 32], strides = [1, 1]} : vector<8x128xf32> to vector<8x32xf32>
    %217 = vector.extract_strided_slice %215 {offsets = [0, 32], sizes = [8, 32], strides = [1, 1]} : vector<8x128xf32> to vector<8x32xf32>
    %218 = vector.extract_strided_slice %215 {offsets = [0, 64], sizes = [8, 32], strides = [1, 1]} : vector<8x128xf32> to vector<8x32xf32>
    %219 = vector.extract_strided_slice %215 {offsets = [0, 96], sizes = [8, 32], strides = [1, 1]} : vector<8x128xf32> to vector<8x32xf32>
    %220 = arith.mulf %217, %202 : vector<8x32xf32>
    %221 = arith.mulf %216, %218 : vector<8x32xf32>
    %222 = arith.addf %220, %221 : vector<8x32xf32>
    %223 = math.tanh %222 : vector<8x32xf32>
    %224 = arith.mulf %219, %223 : vector<8x32xf32>
    %c8_75 = arith.constant 8 : index
    %c0_76 = arith.constant 0 : index
    %225 = vector.load %arg13[%c8_75, %c0_76] : memref<64x32xf32, #tpu.memory_space<vmem>>, vector<8x32xf32>
    tpu.vector_store %arg13[%c8_75, %c0_76], %224 {strides = array<i32>} : memref<64x32xf32, #tpu.memory_space<vmem>>, vector<8x32xf32>,
    %c16_77 = arith.constant 16 : index
    %c0_78 = arith.constant 0 : index
    %226 = vector.load %arg11[%c16_77, %c0_78] : memref<64x128xf32, #tpu.memory_space<vmem>>, vector<8x128xf32>
    %cst_79 = arith.constant dense<0.000000e+00> : vector<8x128xf32>
    %227 = tpu.matmul %224, %183, %cst_79 {dimension_numbers = #tpu.dot_dimension_numbers<[1], [0], [0], [1], [0, 0, 1, 1], [], []>} : vector<8x32xf32>, vector<32x128xf32>, vector<8x128xf32> -> vector<8x128xf32>
    %228 = arith.addf %226, %227 : vector<8x128xf32>
    %229 = math.tanh %228 : vector<8x128xf32>
    %230 = arith.negf %228 : vector<8x128xf32>
    %231 = math.exp %230 : vector<8x128xf32>
    %cst_80 = arith.constant 1.000000e+00 : f32
    %232 = vector.broadcast %cst_80 : f32 to vector<8x128xf32>
    %233 = arith.addf %232, %231 : vector<8x128xf32>
    %234 = arith.divf %232, %233 : vector<8x128xf32>
    %235 = arith.select %5, %229, %234 : vector<8x128xi1>, vector<8x128xf32>
    %236 = vector.extract_strided_slice %235 {offsets = [0, 0], sizes = [8, 32], strides = [1, 1]} : vector<8x128xf32> to vector<8x32xf32>
    %237 = vector.extract_strided_slice %235 {offsets = [0, 32], sizes = [8, 32], strides = [1, 1]} : vector<8x128xf32> to vector<8x32xf32>
    %238 = vector.extract_strided_slice %235 {offsets = [0, 64], sizes = [8, 32], strides = [1, 1]} : vector<8x128xf32> to vector<8x32xf32>
    %239 = vector.extract_strided_slice %235 {offsets = [0, 96], sizes = [8, 32], strides = [1, 1]} : vector<8x128xf32> to vector<8x32xf32>
    %240 = arith.mulf %237, %222 : vector<8x32xf32>
    %241 = arith.mulf %236, %238 : vector<8x32xf32>
    %242 = arith.addf %240, %241 : vector<8x32xf32>
    %243 = math.tanh %242 : vector<8x32xf32>
    %244 = arith.mulf %239, %243 : vector<8x32xf32>
    %c16_81 = arith.constant 16 : index
    %c0_82 = arith.constant 0 : index
    %245 = vector.load %arg13[%c16_81, %c0_82] : memref<64x32xf32, #tpu.memory_space<vmem>>, vector<8x32xf32>
    tpu.vector_store %arg13[%c16_81, %c0_82], %244 {strides = array<i32>} : memref<64x32xf32, #tpu.memory_space<vmem>>, vector<8x32xf32>,
    %c24_83 = arith.constant 24 : index
    %c0_84 = arith.constant 0 : index
    %246 = vector.load %arg11[%c24_83, %c0_84] : memref<64x128xf32, #tpu.memory_space<vmem>>, vector<8x128xf32>
    %cst_85 = arith.constant dense<0.000000e+00> : vector<8x128xf32>
    %247 = tpu.matmul %244, %183, %cst_85 {dimension_numbers = #tpu.dot_dimension_numbers<[1], [0], [0], [1], [0, 0, 1, 1], [], []>} : vector<8x32xf32>, vector<32x128xf32>, vector<8x128xf32> -> vector<8x128xf32>
    %248 = arith.addf %246, %247 : vector<8x128xf32>
    %249 = math.tanh %248 : vector<8x128xf32>
    %250 = arith.negf %248 : vector<8x128xf32>
    %251 = math.exp %250 : vector<8x128xf32>
    %cst_86 = arith.constant 1.000000e+00 : f32
    %252 = vector.broadcast %cst_86 : f32 to vector<8x128xf32>
    %253 = arith.addf %252, %251 : vector<8x128xf32>
    %254 = arith.divf %252, %253 : vector<8x128xf32>
    %255 = arith.select %5, %249, %254 : vector<8x128xi1>, vector<8x128xf32>
    %256 = vector.extract_strided_slice %255 {offsets = [0, 0], sizes = [8, 32], strides = [1, 1]} : vector<8x128xf32> to vector<8x32xf32>
    %257 = vector.extract_strided_slice %255 {offsets = [0, 32], sizes = [8, 32], strides = [1, 1]} : vector<8x128xf32> to vector<8x32xf32>
    %258 = vector.extract_strided_slice %255 {offsets = [0, 64], sizes = [8, 32], strides = [1, 1]} : vector<8x128xf32> to vector<8x32xf32>
    %259 = vector.extract_strided_slice %255 {offsets = [0, 96], sizes = [8, 32], strides = [1, 1]} : vector<8x128xf32> to vector<8x32xf32>
    %260 = arith.mulf %257, %242 : vector<8x32xf32>
    %261 = arith.mulf %256, %258 : vector<8x32xf32>
    %262 = arith.addf %260, %261 : vector<8x32xf32>
    %263 = math.tanh %262 : vector<8x32xf32>
    %264 = arith.mulf %259, %263 : vector<8x32xf32>
    %c24_87 = arith.constant 24 : index
    %c0_88 = arith.constant 0 : index
    %265 = vector.load %arg13[%c24_87, %c0_88] : memref<64x32xf32, #tpu.memory_space<vmem>>, vector<8x32xf32>
    tpu.vector_store %arg13[%c24_87, %c0_88], %264 {strides = array<i32>} : memref<64x32xf32, #tpu.memory_space<vmem>>, vector<8x32xf32>,
    %c32_89 = arith.constant 32 : index
    %c0_90 = arith.constant 0 : index
    %266 = vector.load %arg11[%c32_89, %c0_90] : memref<64x128xf32, #tpu.memory_space<vmem>>, vector<8x128xf32>
    %cst_91 = arith.constant dense<0.000000e+00> : vector<8x128xf32>
    %267 = tpu.matmul %264, %183, %cst_91 {dimension_numbers = #tpu.dot_dimension_numbers<[1], [0], [0], [1], [0, 0, 1, 1], [], []>} : vector<8x32xf32>, vector<32x128xf32>, vector<8x128xf32> -> vector<8x128xf32>
    %268 = arith.addf %266, %267 : vector<8x128xf32>
    %269 = math.tanh %268 : vector<8x128xf32>
    %270 = arith.negf %268 : vector<8x128xf32>
    %271 = math.exp %270 : vector<8x128xf32>
    %cst_92 = arith.constant 1.000000e+00 : f32
    %272 = vector.broadcast %cst_92 : f32 to vector<8x128xf32>
    %273 = arith.addf %272, %271 : vector<8x128xf32>
    %274 = arith.divf %272, %273 : vector<8x128xf32>
    %275 = arith.select %5, %269, %274 : vector<8x128xi1>, vector<8x128xf32>
    %276 = vector.extract_strided_slice %275 {offsets = [0, 0], sizes = [8, 32], strides = [1, 1]} : vector<8x128xf32> to vector<8x32xf32>
    %277 = vector.extract_strided_slice %275 {offsets = [0, 32], sizes = [8, 32], strides = [1, 1]} : vector<8x128xf32> to vector<8x32xf32>
    %278 = vector.extract_strided_slice %275 {offsets = [0, 64], sizes = [8, 32], strides = [1, 1]} : vector<8x128xf32> to vector<8x32xf32>
    %279 = vector.extract_strided_slice %275 {offsets = [0, 96], sizes = [8, 32], strides = [1, 1]} : vector<8x128xf32> to vector<8x32xf32>
    %280 = arith.mulf %277, %262 : vector<8x32xf32>
    %281 = arith.mulf %276, %278 : vector<8x32xf32>
    %282 = arith.addf %280, %281 : vector<8x32xf32>
    %283 = math.tanh %282 : vector<8x32xf32>
    %284 = arith.mulf %279, %283 : vector<8x32xf32>
    %c32_93 = arith.constant 32 : index
    %c0_94 = arith.constant 0 : index
    %285 = vector.load %arg13[%c32_93, %c0_94] : memref<64x32xf32, #tpu.memory_space<vmem>>, vector<8x32xf32>
    tpu.vector_store %arg13[%c32_93, %c0_94], %284 {strides = array<i32>} : memref<64x32xf32, #tpu.memory_space<vmem>>, vector<8x32xf32>,
    %c40_95 = arith.constant 40 : index
    %c0_96 = arith.constant 0 : index
    %286 = vector.load %arg11[%c40_95, %c0_96] : memref<64x128xf32, #tpu.memory_space<vmem>>, vector<8x128xf32>
    %cst_97 = arith.constant dense<0.000000e+00> : vector<8x128xf32>
    %287 = tpu.matmul %284, %183, %cst_97 {dimension_numbers = #tpu.dot_dimension_numbers<[1], [0], [0], [1], [0, 0, 1, 1], [], []>} : vector<8x32xf32>, vector<32x128xf32>, vector<8x128xf32> -> vector<8x128xf32>
    %288 = arith.addf %286, %287 : vector<8x128xf32>
    %289 = math.tanh %288 : vector<8x128xf32>
    %290 = arith.negf %288 : vector<8x128xf32>
    %291 = math.exp %290 : vector<8x128xf32>
    %cst_98 = arith.constant 1.000000e+00 : f32
    %292 = vector.broadcast %cst_98 : f32 to vector<8x128xf32>
    %293 = arith.addf %292, %291 : vector<8x128xf32>
    %294 = arith.divf %292, %293 : vector<8x128xf32>
    %295 = arith.select %5, %289, %294 : vector<8x128xi1>, vector<8x128xf32>
    %296 = vector.extract_strided_slice %295 {offsets = [0, 0], sizes = [8, 32], strides = [1, 1]} : vector<8x128xf32> to vector<8x32xf32>
    %297 = vector.extract_strided_slice %295 {offsets = [0, 32], sizes = [8, 32], strides = [1, 1]} : vector<8x128xf32> to vector<8x32xf32>
    %298 = vector.extract_strided_slice %295 {offsets = [0, 64], sizes = [8, 32], strides = [1, 1]} : vector<8x128xf32> to vector<8x32xf32>
    %299 = vector.extract_strided_slice %295 {offsets = [0, 96], sizes = [8, 32], strides = [1, 1]} : vector<8x128xf32> to vector<8x32xf32>
    %300 = arith.mulf %297, %282 : vector<8x32xf32>
    %301 = arith.mulf %296, %298 : vector<8x32xf32>
    %302 = arith.addf %300, %301 : vector<8x32xf32>
    %303 = math.tanh %302 : vector<8x32xf32>
    %304 = arith.mulf %299, %303 : vector<8x32xf32>
    %c40_99 = arith.constant 40 : index
    %c0_100 = arith.constant 0 : index
    %305 = vector.load %arg13[%c40_99, %c0_100] : memref<64x32xf32, #tpu.memory_space<vmem>>, vector<8x32xf32>
    tpu.vector_store %arg13[%c40_99, %c0_100], %304 {strides = array<i32>} : memref<64x32xf32, #tpu.memory_space<vmem>>, vector<8x32xf32>,
    %c48_101 = arith.constant 48 : index
    %c0_102 = arith.constant 0 : index
    %306 = vector.load %arg11[%c48_101, %c0_102] : memref<64x128xf32, #tpu.memory_space<vmem>>, vector<8x128xf32>
    %cst_103 = arith.constant dense<0.000000e+00> : vector<8x128xf32>
    %307 = tpu.matmul %304, %183, %cst_103 {dimension_numbers = #tpu.dot_dimension_numbers<[1], [0], [0], [1], [0, 0, 1, 1], [], []>} : vector<8x32xf32>, vector<32x128xf32>, vector<8x128xf32> -> vector<8x128xf32>
    %308 = arith.addf %306, %307 : vector<8x128xf32>
    %309 = math.tanh %308 : vector<8x128xf32>
    %310 = arith.negf %308 : vector<8x128xf32>
    %311 = math.exp %310 : vector<8x128xf32>
    %cst_104 = arith.constant 1.000000e+00 : f32
    %312 = vector.broadcast %cst_104 : f32 to vector<8x128xf32>
    %313 = arith.addf %312, %311 : vector<8x128xf32>
    %314 = arith.divf %312, %313 : vector<8x128xf32>
    %315 = arith.select %5, %309, %314 : vector<8x128xi1>, vector<8x128xf32>
    %316 = vector.extract_strided_slice %315 {offsets = [0, 0], sizes = [8, 32], strides = [1, 1]} : vector<8x128xf32> to vector<8x32xf32>
    %317 = vector.extract_strided_slice %315 {offsets = [0, 32], sizes = [8, 32], strides = [1, 1]} : vector<8x128xf32> to vector<8x32xf32>
    %318 = vector.extract_strided_slice %315 {offsets = [0, 64], sizes = [8, 32], strides = [1, 1]} : vector<8x128xf32> to vector<8x32xf32>
    %319 = vector.extract_strided_slice %315 {offsets = [0, 96], sizes = [8, 32], strides = [1, 1]} : vector<8x128xf32> to vector<8x32xf32>
    %320 = arith.mulf %317, %302 : vector<8x32xf32>
    %321 = arith.mulf %316, %318 : vector<8x32xf32>
    %322 = arith.addf %320, %321 : vector<8x32xf32>
    %323 = math.tanh %322 : vector<8x32xf32>
    %324 = arith.mulf %319, %323 : vector<8x32xf32>
    %c48_105 = arith.constant 48 : index
    %c0_106 = arith.constant 0 : index
    %325 = vector.load %arg13[%c48_105, %c0_106] : memref<64x32xf32, #tpu.memory_space<vmem>>, vector<8x32xf32>
    tpu.vector_store %arg13[%c48_105, %c0_106], %324 {strides = array<i32>} : memref<64x32xf32, #tpu.memory_space<vmem>>, vector<8x32xf32>,
    %c56_107 = arith.constant 56 : index
    %c0_108 = arith.constant 0 : index
    %326 = vector.load %arg11[%c56_107, %c0_108] : memref<64x128xf32, #tpu.memory_space<vmem>>, vector<8x128xf32>
    %cst_109 = arith.constant dense<0.000000e+00> : vector<8x128xf32>
    %327 = tpu.matmul %324, %183, %cst_109 {dimension_numbers = #tpu.dot_dimension_numbers<[1], [0], [0], [1], [0, 0, 1, 1], [], []>} : vector<8x32xf32>, vector<32x128xf32>, vector<8x128xf32> -> vector<8x128xf32>
    %328 = arith.addf %326, %327 : vector<8x128xf32>
    %329 = math.tanh %328 : vector<8x128xf32>
    %330 = arith.negf %328 : vector<8x128xf32>
    %331 = math.exp %330 : vector<8x128xf32>
    %cst_110 = arith.constant 1.000000e+00 : f32
    %332 = vector.broadcast %cst_110 : f32 to vector<8x128xf32>
    %333 = arith.addf %332, %331 : vector<8x128xf32>
    %334 = arith.divf %332, %333 : vector<8x128xf32>
    %335 = arith.select %5, %329, %334 : vector<8x128xi1>, vector<8x128xf32>
    %336 = vector.extract_strided_slice %335 {offsets = [0, 0], sizes = [8, 32], strides = [1, 1]} : vector<8x128xf32> to vector<8x32xf32>
    %337 = vector.extract_strided_slice %335 {offsets = [0, 32], sizes = [8, 32], strides = [1, 1]} : vector<8x128xf32> to vector<8x32xf32>
    %338 = vector.extract_strided_slice %335 {offsets = [0, 64], sizes = [8, 32], strides = [1, 1]} : vector<8x128xf32> to vector<8x32xf32>
    %339 = vector.extract_strided_slice %335 {offsets = [0, 96], sizes = [8, 32], strides = [1, 1]} : vector<8x128xf32> to vector<8x32xf32>
    %340 = arith.mulf %337, %322 : vector<8x32xf32>
    %341 = arith.mulf %336, %338 : vector<8x32xf32>
    %342 = arith.addf %340, %341 : vector<8x32xf32>
    %343 = math.tanh %342 : vector<8x32xf32>
    %344 = arith.mulf %339, %343 : vector<8x32xf32>
    %c56_111 = arith.constant 56 : index
    %c0_112 = arith.constant 0 : index
    %345 = vector.load %arg13[%c56_111, %c0_112] : memref<64x32xf32, #tpu.memory_space<vmem>>, vector<8x32xf32>
    tpu.vector_store %arg13[%c56_111, %c0_112], %344 {strides = array<i32>} : memref<64x32xf32, #tpu.memory_space<vmem>>, vector<8x32xf32>,
    %c0_113 = arith.constant 0 : index
    %c0_114 = arith.constant 0 : index
    %346 = vector.load %arg13[%c0_113, %c0_114] : memref<64x32xf32, #tpu.memory_space<vmem>>, vector<64x32xf32>
    %c0_115 = arith.constant 0 : index
    %c0_116 = arith.constant 0 : index
    %347 = vector.load %arg8[%c0_115, %c0_116] : memref<32x128xf32, #tpu.memory_space<vmem>>, vector<32x128xf32>
    %cst_117 = arith.constant dense<0.000000e+00> : vector<64x128xf32>
    %348 = tpu.matmul %346, %347, %cst_117 {dimension_numbers = #tpu.dot_dimension_numbers<[1], [0], [0], [1], [0, 0, 1, 1], [], []>} : vector<64x32xf32>, vector<32x128xf32>, vector<64x128xf32> -> vector<64x128xf32>
    %c0_118 = arith.constant 0 : index
    %c0_119 = arith.constant 0 : index
    %349 = vector.load %arg9[%c0_118, %c0_119] : memref<1x128xf32, #tpu.memory_space<vmem>>, vector<1x128xf32>
    %350 = vector.broadcast %349 : vector<1x128xf32> to vector<64x128xf32>
    %351 = arith.addf %348, %350 : vector<64x128xf32>
    %c0_120 = arith.constant 0 : index
    %c0_121 = arith.constant 0 : index
    %352 = vector.load %arg10[%c0_120, %c0_121] : memref<64x128xf32, #tpu.memory_space<vmem>>, vector<64x128xf32>
    tpu.vector_store %arg10[%c0_120, %c0_121], %351 {strides = array<i32>} : memref<64x128xf32, #tpu.memory_space<vmem>>, vector<64x128xf32>,
    return
  }
  func.func @transform_0(%arg0: i32) -> (i32, i32) {
    %c0_i32 = arith.constant 0 : i32
    %c0_i32_0 = arith.constant 0 : i32
    %c0_i32_1 = arith.constant 0 : i32
    return %c0_i32, %c0_i32_0 : i32, i32
  }
  func.func @transform_1(%arg0: i32) -> (i32, i32) {
    %c0_i32 = arith.constant 0 : i32
    %c0_i32_0 = arith.constant 0 : i32
    %c0_i32_1 = arith.constant 0 : i32
    return %c0_i32, %c0_i32_0 : i32, i32
  }
  func.func @transform_2(%arg0: i32) -> (i32, i32) {
    %c0_i32 = arith.constant 0 : i32
    %c0_i32_0 = arith.constant 0 : i32
    %c0_i32_1 = arith.constant 0 : i32
    return %c0_i32, %c0_i32_0 : i32, i32
  }
  func.func @transform_3(%arg0: i32) -> (i32, i32) {
    %c0_i32 = arith.constant 0 : i32
    %c0_i32_0 = arith.constant 0 : i32
    %c0_i32_1 = arith.constant 0 : i32
    return %c0_i32, %c0_i32_0 : i32, i32
  }
  func.func @transform_4(%arg0: i32) -> (i32, i32) {
    %c0_i32 = arith.constant 0 : i32
    %c0_i32_0 = arith.constant 0 : i32
    %c0_i32_1 = arith.constant 0 : i32
    return %c0_i32, %c0_i32_0 : i32, i32
  }
  func.func @transform_5(%arg0: i32) -> (i32, i32) {
    %c0_i32 = arith.constant 0 : i32
    %c0_i32_0 = arith.constant 0 : i32
    %c0_i32_1 = arith.constant 0 : i32
    return %c0_i32, %c0_i32_0 : i32, i32
  }
  func.func @transform_6(%arg0: i32) -> (i32, i32) {
    %c0_i32 = arith.constant 0 : i32
    %c0_i32_0 = arith.constant 0 : i32
    %c0_i32_1 = arith.constant 0 : i32
    return %c0_i32, %c0_i32_0 : i32, i32
  }
  func.func @transform_7(%arg0: i32) -> (i32, i32) {
    %c0_i32 = arith.constant 0 : i32
    %c0_i32_0 = arith.constant 0 : i32
    return %c0_i32, %arg0 : i32, i32
  }
  func.func @transform_8(%arg0: i32) -> (i32, i32) {
    %c0_i32 = arith.constant 0 : i32
    %c0_i32_0 = arith.constant 0 : i32
    return %c0_i32, %arg0 : i32, i32
  }
  func.func @transform_9(%arg0: i32) -> (i32, i32) {
    %c0_i32 = arith.constant 0 : i32
    %c0_i32_0 = arith.constant 0 : i32
    return %c0_i32, %arg0 : i32, i32
  }
}

</mosaic_0001>

<llo_original>
// kernel: tpu_custom_call.1
$region0: #{tpu_custom_call.1}
  #allocation0 [shape = 'u32[]', space=smem, size = 0x4, offset = 0x4, fixed_abs, tag = 'smem constant byte address 0x4 - core index']
  #allocation1 [shape = 'u32[72,128]{1,0:T(1,128)}', space=vmem, size = 0x9000, scoped, tag = 'internal scratch']
  #allocation2 [shape = 'f32[64,128]{1,0:T(8,128)}', space=vmem, size = 0x8000, scoped, tag = 'scratch operand']
  #allocation3 [shape = 'f32[64,32]{1,0:T(8,128)}', space=vmem, size = 0x8000, scoped, tag = 'scratch operand']
  #allocation4 [shape = 'f32[64,32]{1,0:T(8,128)}', space=vmem, size = 0x8000, scoped, tag = 'scratch operand']
  %s0 = inlined_call_operand.vmem [shape: f32[64,32], index: 0, kind: input, shape index: {}]
  %s1 = inlined_call_operand.hbm [shape: f32[32,128], index: 1, kind: input, shape index: {}]
  %s2 = inlined_call_operand.hbm [shape: f32[32,128], index: 2, kind: input, shape index: {}]
  %s3 = inlined_call_operand.vmem [shape: f32[1,128], index: 3, kind: input, shape index: {}]
  %s4 = inlined_call_operand.hbm [shape: f32[32,128], index: 4, kind: input, shape index: {}]
  %s5 = inlined_call_operand.hbm [shape: f32[32,128], index: 5, kind: input, shape index: {}]
  %s6 = inlined_call_operand.vmem [shape: f32[1,128], index: 6, kind: input, shape index: {}]
  %s7 = inlined_call_operand.vmem [shape: f32[32,384], index: 7, kind: input, shape index: {}]
  %s8 = inlined_call_operand.vmem [shape: f32[1,384], index: 8, kind: input, shape index: {}]
  %s9 = inlined_call_operand.hbm [shape: f32[64,384], index: 9, kind: output, shape index: {}]
  %s10 = sld [smem:[#allocation0]]
  $region123: #{tpu_custom_call.1} parent=0
    _
  %s12 = ssub.s32 1, %s10
  %s13 = scalar_select 0, %s12, %s10
  $region1: #{tpu_custom_call.1} parent=0
    #allocation5 [shape = 'u8[16384]{0}', space=vmem, size = 0x4000, scoped, tag = 'input window, operand 1, single buffered']
    #allocation6 [shape = 's32[2]{0}', space=sflag, size = 0x8, scoped, tag = 'scoped memory for tpu_custom_call.1']
    #allocation7 [shape = 's32[2]{0}', space=sflag, size = 0x8, scoped, tag = 'scoped memory for tpu_custom_call.1']
    #allocation8 [shape = 'u8[16384]{0}', space=vmem, size = 0x4000, scoped, tag = 'input window, operand 2, single buffered']
    #allocation9 [shape = 's32[1]{0}', space=sflag, size = 0x4, scoped, tag = 'scoped memory for tpu_custom_call.1']
    #allocation10 [shape = 'u8[16384]{0}', space=vmem, size = 0x4000, scoped, tag = 'input window, operand 4, single buffered']
    #allocation11 [shape = 'u8[16384]{0}', space=vmem, size = 0x4000, scoped, tag = 'input window, operand 5, single buffered']
    #allocation12 [shape = 's32[1]{0}', space=sflag, size = 0x4, scoped, tag = 'scoped memory for tpu_custom_call.1']
    #allocation13 [shape = 'u8[32768]{0}', space=vmem, size = 0x8000, scoped, tag = 'input window, operand 7']
    #allocation14 [shape = 'u8[65536]{0}', space=vmem, size = 0x10000, scoped, tag = 'output window, operand 0']
    %14 = vsyncpa [#allocation6], 0
    %15 = vsyncpa [#allocation9], 0
    %16 = vsyncpa [#allocation12], 0
    %17 = vsyncpa [#allocation7], 0
    %s18 = scalar_lea.sflag [#allocation7], 1
    %19 = vsyncpa %s18, 0
    loop: start=0, step=1, limit=5
    $region2: #{tpu_custom_call.1} parent=1 // loop_pre_header
      _
    $region3: #{tpu_custom_call.1} parent=1 // loop_header
      %s21 = sphi 0, %s25
      %p22 = scmp.ge.s32.totalorder %s21, 5
      %s29 = sphi 0, %s29
      %s31 = sphi 0, %s29
      %s32 = sphi 0, %s31
      %s46 = sphi 0, %s32
      %s50 = sphi 0, %s50
      %s52 = sphi 0, %s50
      %s53 = sphi 0, %s52
      %s67 = sphi 0, %s53
      %s71 = sphi 0, %s71
      %s73 = sphi 0, %s71
      %s74 = sphi 0, %s73
      %s88 = sphi 0, %s74
      %s92 = sphi 0, %s92
      %s94 = sphi 0, %s92
      %s95 = sphi 0, %s94
      %s109 = sphi 0, %s95
      %s113 = sphi 0, %s113
      %s115 = sphi 0, %s113
      %s116 = sphi 0, %s115
      %s130 = sphi 0, %s116
      %s134 = sphi 0, %s134
      %s136 = sphi 0, %s134
      %s137 = sphi 0, %s136
      %s151 = sphi 0, %s137
      %s155 = sphi 0, %s155
      %s157 = sphi 0, %s155
      %s158 = sphi 0, %s157
      %s172 = sphi 0, %s158
      %s178 = sphi 0, %s180
      %s181 = sphi 0, %s178
      %s182 = sphi 0, %s181
      %s198 = sphi 0, %s182
      %s204 = sphi 0, %s206
      %s207 = sphi 0, %s204
      %s208 = sphi 0, %s207
      %s224 = sphi 0, %s208
      %s230 = sphi 0, %s232
      %s233 = sphi 0, %s230
      %s234 = sphi 0, %s233
      %s250 = sphi 0, %s234
    $region4: #{tpu_custom_call.1} parent=1 // loop_header_branch
      %24 = sbr.rel (%p22) target = $region8
    $region5: #{tpu_custom_call.1} parent=1 // loop_body
      %s26 = ssub.s32 %s21, 1
      %s27 = ssub.s32 %s21, 2
      %s28 = sadd.s32 %s21, 1
      %s30 = sadd.s32 %s29, 1
      %p33 = scmp.eq.s32.totalorder %s21, 2
      %p34 = scmp.ne.s32.totalorder %s29, %s31
      %p35 = scmp.eq.s32.totalorder %s21, 0
      %p36 = por %p34, %p35
      %p37 = scmp.ne.s32.totalorder %s29, %s31
      %p38 = scmp.eq.s32.totalorder %s26, 2
      %p39 = por %p37, %p38
      %p40 = scmp.ne.s32.totalorder %s31, %s32
      %p41 = scmp.eq.s32.totalorder %s26, 0
      %p42 = por %p40, %p41
      %p43 = scmp.ne.s32.totalorder %s31, %s32
      %p44 = scmp.eq.s32.totalorder %s27, 2
      %p45 = por %p43, %p44
      %p47 = scmp.ne.s32.totalorder %s32, %s46
      %p48 = scmp.eq.s32.totalorder %s27, 0
      %p49 = por %p47, %p48
      %s51 = sadd.s32 %s50, 1
      %p54 = scmp.eq.s32.totalorder %s21, 2
      %p55 = scmp.ne.s32.totalorder %s50, %s52
      %p56 = scmp.eq.s32.totalorder %s21, 0
      %p57 = por %p55, %p56
      %p58 = scmp.ne.s32.totalorder %s50, %s52
      %p59 = scmp.eq.s32.totalorder %s26, 2
      %p60 = por %p58, %p59
      %p61 = scmp.ne.s32.totalorder %s52, %s53
      %p62 = scmp.eq.s32.totalorder %s26, 0
      %p63 = por %p61, %p62
      %p64 = scmp.ne.s32.totalorder %s52, %s53
      %p65 = scmp.eq.s32.totalorder %s27, 2
      %p66 = por %p64, %p65
      %p68 = scmp.ne.s32.totalorder %s53, %s67
      %p69 = scmp.eq.s32.totalorder %s27, 0
      %p70 = por %p68, %p69
      %s72 = sadd.s32 %s71, 1
      %p75 = scmp.eq.s32.totalorder %s21, 2
      %p76 = scmp.ne.s32.totalorder %s71, %s73
      %p77 = scmp.eq.s32.totalorder %s21, 0
      %p78 = por %p76, %p77
      %p79 = scmp.ne.s32.totalorder %s71, %s73
      %p80 = scmp.eq.s32.totalorder %s26, 2
      %p81 = por %p79, %p80
      %p82 = scmp.ne.s32.totalorder %s73, %s74
      %p83 = scmp.eq.s32.totalorder %s26, 0
      %p84 = por %p82, %p83
      %p85 = scmp.ne.s32.totalorder %s73, %s74
      %p86 = scmp.eq.s32.totalorder %s27, 2
      %p87 = por %p85, %p86
      %p89 = scmp.ne.s32.totalorder %s74, %s88
      %p90 = scmp.eq.s32.totalorder %s27, 0
      %p91 = por %p89, %p90
      %s93 = sadd.s32 %s92, 1
      %p96 = scmp.eq.s32.totalorder %s21, 2
      %p97 = scmp.ne.s32.totalorder %s92, %s94
      %p98 = scmp.eq.s32.totalorder %s21, 0
      %p99 = por %p97, %p98
      %p100 = scmp.ne.s32.totalorder %s92, %s94
      %p101 = scmp.eq.s32.totalorder %s26, 2
      %p102 = por %p100, %p101
      %p103 = scmp.ne.s32.totalorder %s94, %s95
      %p104 = scmp.eq.s32.totalorder %s26, 0
      %p105 = por %p103, %p104
      %p106 = scmp.ne.s32.totalorder %s94, %s95
      %p107 = scmp.eq.s32.totalorder %s27, 2
      %p108 = por %p106, %p107
      %p110 = scmp.ne.s32.totalorder %s95, %s109
      %p111 = scmp.eq.s32.totalorder %s27, 0
      %p112 = por %p110, %p111
      %s114 = sadd.s32 %s113, 1
      %p117 = scmp.eq.s32.totalorder %s21, 2
      %p118 = scmp.ne.s32.totalorder %s113, %s115
      %p119 = scmp.eq.s32.totalorder %s21, 0
      %p120 = por %p118, %p119
      %p121 = scmp.ne.s32.totalorder %s113, %s115
      %p122 = scmp.eq.s32.totalorder %s26, 2
      %p123 = por %p121, %p122
      %p124 = scmp.ne.s32.totalorder %s115, %s116
      %p125 = scmp.eq.s32.totalorder %s26, 0
      %p126 = por %p124, %p125
      %p127 = scmp.ne.s32.totalorder %s115, %s116
      %p128 = scmp.eq.s32.totalorder %s27, 2
      %p129 = por %p127, %p128
      %p131 = scmp.ne.s32.totalorder %s116, %s130
      %p132 = scmp.eq.s32.totalorder %s27, 0
      %p133 = por %p131, %p132
      %s135 = sadd.s32 %s134, 1
      %p138 = scmp.eq.s32.totalorder %s21, 2
      %p139 = scmp.ne.s32.totalorder %s134, %s136
      %p140 = scmp.eq.s32.totalorder %s21, 0
      %p141 = por %p139, %p140
      %p142 = scmp.ne.s32.totalorder %s134, %s136
      %p143 = scmp.eq.s32.totalorder %s26, 2
      %p144 = por %p142, %p143
      %p145 = scmp.ne.s32.totalorder %s136, %s137
      %p146 = scmp.eq.s32.totalorder %s26, 0
      %p147 = por %p145, %p146
      %p148 = scmp.ne.s32.totalorder %s136, %s137
      %p149 = scmp.eq.s32.totalorder %s27, 2
      %p150 = por %p148, %p149
      %p152 = scmp.ne.s32.totalorder %s137, %s151
      %p153 = scmp.eq.s32.totalorder %s27, 0
      %p154 = por %p152, %p153
      %s156 = sadd.s32 %s155, 1
      %p159 = scmp.eq.s32.totalorder %s21, 2
      %p160 = scmp.ne.s32.totalorder %s155, %s157
      %p161 = scmp.eq.s32.totalorder %s21, 0
      %p162 = por %p160, %p161
      %p163 = scmp.ne.s32.totalorder %s155, %s157
      %p164 = scmp.eq.s32.totalorder %s26, 2
      %p165 = por %p163, %p164
      %p166 = scmp.ne.s32.totalorder %s157, %s158
      %p167 = scmp.eq.s32.totalorder %s26, 0
      %p168 = por %p166, %p167
      %p169 = scmp.ne.s32.totalorder %s157, %s158
      %p170 = scmp.eq.s32.totalorder %s27, 2
      %p171 = por %p169, %p170
      %p173 = scmp.ne.s32.totalorder %s158, %s172
      %p174 = scmp.eq.s32.totalorder %s27, 0
      %p175 = por %p173, %p174
      %s176 = ssub.s32 %s21, %s28
      %p177 = scmp.eq.s32.totalorder %s176, 0
      %s179 = sadd.s32 %s178, 1
      %s180 = scalar_select %p177, %s178, %s179
      %p183 = pneg %p177
      %p184 = scmp.eq.s32.totalorder %s21, 2
      %p185 = por %p183, %p184
      %p186 = scmp.ne.s32.totalorder %s178, %s181
      %p187 = scmp.eq.s32.totalorder %s21, 0
      %p188 = por %p186, %p187
      %p189 = scmp.ne.s32.totalorder %s178, %s181
      %p190 = scmp.eq.s32.totalorder %s26, 2
      %p191 = por %p189, %p190
      %p192 = scmp.ne.s32.totalorder %s181, %s182
      %p193 = scmp.eq.s32.totalorder %s26, 0
      %p194 = por %p192, %p193
      %p195 = scmp.ne.s32.totalorder %s181, %s182
      %p196 = scmp.eq.s32.totalorder %s27, 2
      %p197 = por %p195, %p196
      %p199 = scmp.ne.s32.totalorder %s182, %s198
      %p200 = scmp.eq.s32.totalorder %s27, 0
      %p201 = por %p199, %p200
      %s202 = ssub.s32 %s21, %s28
      %p203 = scmp.eq.s32.totalorder %s202, 0
      %s205 = sadd.s32 %s204, 1
      %s206 = scalar_select %p203, %s204, %s205
      %p209 = pneg %p203
      %p210 = scmp.eq.s32.totalorder %s21, 2
      %p211 = por %p209, %p210
      %p212 = scmp.ne.s32.totalorder %s204, %s207
      %p213 = scmp.eq.s32.totalorder %s21, 0
      %p214 = por %p212, %p213
      %p215 = scmp.ne.s32.totalorder %s204, %s207
      %p216 = scmp.eq.s32.totalorder %s26, 2
      %p217 = por %p215, %p216
      %p218 = scmp.ne.s32.totalorder %s207, %s208
      %p219 = scmp.eq.s32.totalorder %s26, 0
      %p220 = por %p218, %p219
      %p221 = scmp.ne.s32.totalorder %s207, %s208
      %p222 = scmp.eq.s32.totalorder %s27, 2
      %p223 = por %p221, %p222
      %p225 = scmp.ne.s32.totalorder %s208, %s224
      %p226 = scmp.eq.s32.totalorder %s27, 0
      %p227 = por %p225, %p226
      %s228 = ssub.s32 %s21, %s28
      %p229 = scmp.eq.s32.totalorder %s228, 0
      %s231 = sadd.s32 %s230, 1
      %s232 = scalar_select %p229, %s230, %s231
      %p235 = pneg %p229
      %p236 = scmp.eq.s32.totalorder %s21, 2
      %p237 = por %p235, %p236
      %p238 = scmp.ne.s32.totalorder %s230, %s233
      %p239 = scmp.eq.s32.totalorder %s21, 0
      %p240 = por %p238, %p239
      %p241 = scmp.ne.s32.totalorder %s230, %s233
      %p242 = scmp.eq.s32.totalorder %s26, 2
      %p243 = por %p241, %p242
      %p244 = scmp.ne.s32.totalorder %s233, %s234
      %p245 = scmp.eq.s32.totalorder %s26, 0
      %p246 = por %p244, %p245
      %p247 = scmp.ne.s32.totalorder %s233, %s234
      %p248 = scmp.eq.s32.totalorder %s27, 2
      %p249 = por %p247, %p248
      %p251 = scmp.ne.s32.totalorder %s234, %s250
      %p252 = scmp.eq.s32.totalorder %s27, 0
      %p253 = por %p251, %p252
      %p254 = scmp.le.s32.totalorder 1, %s21
      %p255 = scmp.lt.s32.totalorder %s21, 4
      %p256 = pnand %p254, %p255
      %p257 = pneg %p256
      // Predicated region
      $region9: #{tpu_custom_call.1} parent=5 // pred_check
        _
      $region10: #{tpu_custom_call.1} parent=5 // pred_check_branch
        %259 = sbr.rel (%p256) target = $region12
      $region11: #{tpu_custom_call.1} parent=5 // pred_region
        %s260 = ssub.s32 %s21, 1
        // Predicated region
        $region13: #{tpu_custom_call.1} parent=11 // pred_check
          %p261 = pneg %p42
        $region14: #{tpu_custom_call.1} parent=11 // pred_check_branch
          %263 = sbr.rel (%p261) target = $region16
        $region15: #{tpu_custom_call.1} parent=11 // pred_region
          _
        $region16: #{tpu_custom_call.1} parent=11 // pred_fallthru
          _
        // Predicated region
        $region17: #{tpu_custom_call.1} parent=11 // pred_check
          %p264 = pneg %p63
        $region18: #{tpu_custom_call.1} parent=11 // pred_check_branch
          %266 = sbr.rel (%p264) target = $region20
        $region19: #{tpu_custom_call.1} parent=11 // pred_region
          %268 = vsyncadd [#allocation6], 0
          %s269 = sshll.u32 %s1, 4
          %s270 = int_to_ptr.hbm [resolvable:$true] %s269
          %s271 = sshll.u32 [#allocation5], 4
          %s272 = int_to_ptr.vmem [resolvable:$true] %s271
          %277 = dma.hbm_to_vmem [thread:$0]  %s270, 512, %s272, [#allocation6], 128, 128, 8
        $region20: #{tpu_custom_call.1} parent=11 // pred_fallthru
          _
        // Predicated region
        $region21: #{tpu_custom_call.1} parent=11 // pred_check
          %p278 = pneg %p84
        $region22: #{tpu_custom_call.1} parent=11 // pred_check_branch
          %280 = sbr.rel (%p278) target = $region24
        $region23: #{tpu_custom_call.1} parent=11 // pred_region
          %282 = vsyncadd [#allocation9], 0
          %s283 = sshll.u32 %s2, 4
          %s284 = int_to_ptr.hbm [resolvable:$true] %s283
          %s285 = sshll.u32 [#allocation8], 4
          %s286 = int_to_ptr.vmem [resolvable:$true] %s285
          %291 = dma.hbm_to_vmem [thread:$0]  %s284, 512, %s286, [#allocation9], 128, 128, 8
        $region24: #{tpu_custom_call.1} parent=11 // pred_fallthru
          _
        // Predicated region
        $region25: #{tpu_custom_call.1} parent=11 // pred_check
          %p292 = pneg %p105
        $region26: #{tpu_custom_call.1} parent=11 // pred_check_branch
          %294 = sbr.rel (%p292) target = $region28
        $region27: #{tpu_custom_call.1} parent=11 // pred_region
          _
        $region28: #{tpu_custom_call.1} parent=11 // pred_fallthru
          _
        // Predicated region
        $region29: #{tpu_custom_call.1} parent=11 // pred_check
          %p295 = pneg %p126
        $region30: #{tpu_custom_call.1} parent=11 // pred_check_branch
          %297 = sbr.rel (%p295) target = $region32
        $region31: #{tpu_custom_call.1} parent=11 // pred_region
          %299 = vsyncadd [#allocation9], 0
          %s300 = sshll.u32 %s4, 4
          %s301 = int_to_ptr.hbm [resolvable:$true] %s300
          %s302 = sshll.u32 [#allocation10], 4
          %s303 = int_to_ptr.vmem [resolvable:$true] %s302
          %308 = dma.hbm_to_vmem [thread:$0]  %s301, 512, %s303, [#allocation9], 128, 128, 8
        $region32: #{tpu_custom_call.1} parent=11 // pred_fallthru
          _
        // Predicated region
        $region33: #{tpu_custom_call.1} parent=11 // pred_check
          %p309 = pneg %p147
        $region34: #{tpu_custom_call.1} parent=11 // pred_check_branch
          %311 = sbr.rel (%p309) target = $region36
        $region35: #{tpu_custom_call.1} parent=11 // pred_region
          %313 = vsyncadd [#allocation12], 0
          %s314 = sshll.u32 %s5, 4
          %s315 = int_to_ptr.hbm [resolvable:$true] %s314
          %s316 = sshll.u32 [#allocation11], 4
          %s317 = int_to_ptr.vmem [resolvable:$true] %s316
          %322 = dma.hbm_to_vmem [thread:$0]  %s315, 512, %s317, [#allocation12], 128, 128, 8
        $region36: #{tpu_custom_call.1} parent=11 // pred_fallthru
          _
        // Predicated region
        $region37: #{tpu_custom_call.1} parent=11 // pred_check
          %p323 = pneg %p168
        $region38: #{tpu_custom_call.1} parent=11 // pred_check_branch
          %325 = sbr.rel (%p323) target = $region40
        $region39: #{tpu_custom_call.1} parent=11 // pred_region
          _
        $region40: #{tpu_custom_call.1} parent=11 // pred_fallthru
          _
      $region12: #{tpu_custom_call.1} parent=5 // pred_fallthru
        _
      %p326 = scmp.lt.s32.totalorder %s21, 3
      // Predicated region
      $region41: #{tpu_custom_call.1} parent=5 // pred_check
        %p327 = pneg %p326
      $region42: #{tpu_custom_call.1} parent=5 // pred_check_branch
        %329 = sbr.rel (%p327) target = $region44
      $region43: #{tpu_custom_call.1} parent=5 // pred_region
        // Predicated region
        $region45: #{tpu_custom_call.1} parent=43 // pred_check
          %p330 = pneg %p188
        $region46: #{tpu_custom_call.1} parent=43 // pred_check_branch
          %332 = sbr.rel (%p330) target = $region48
        $region47: #{tpu_custom_call.1} parent=43 // pred_region
          %s333 = sand.u32 %s178, 1
          %s334 = sand.u32 %s178, 1
          %s335 = smul.addr %s334, 32
          %s336 = scalar_lea.vmem [#allocation13], %s335
          %s337 = smul.addr %s21, 8
          %s338 = scalar_lea.vmem %s7, %s337
          // Predicated region
          $region49: #{tpu_custom_call.1} parent=47 // pred_check
            _
          $region50: #{tpu_custom_call.1} parent=47 // pred_check_branch
            %340 = sbr.rel (0) target = $region52
          $region51: #{tpu_custom_call.1} parent=47 // pred_region
            // Predicated region
            $region53: #{tpu_custom_call.1} parent=51 // pred_check
              _
            $region54: #{tpu_custom_call.1} parent=51 // pred_check_branch
              %342 = sbr.rel (0) target = $region56
            $region55: #{tpu_custom_call.1} parent=51 // pred_region
              // Predicated region
              $region68: #{tpu_custom_call.1} parent=55 // pred_check
                _
              $region69: #{tpu_custom_call.1} parent=55 // pred_check_branch
                %364 = sbr.rel (0) target = $region71
              $region70: #{tpu_custom_call.1} parent=55 // pred_region
                loop: start=0, step=1, limit=1
                $region72: #{tpu_custom_call.1} parent=70 // loop_pre_header
                  _
                $region73: #{tpu_custom_call.1} parent=70 // loop_header
                  %s366 = sphi 0, %s370
                  %p367 = scmp.ge.s32.totalorder %s366, 1
                  %s371 = sphi %s338, %s338
                  %s372 = sphi %s336, %s336
                $region74: #{tpu_custom_call.1} parent=70 // loop_header_branch
                  %369 = sbr.rel (%p367) target = $region78
                $region75: #{tpu_custom_call.1} parent=70 // loop_body
                  %v373 = vld [vmem:[%s371] sm:$0xff]
                  %374 = vst [vmem:[%s372] sm:$0xff] %v373
                  %v375 = vld [vmem:[%s371 + $0x18] sm:$0xff]
                  %376 = vst [vmem:[%s372 + $0x8] sm:$0xff] %v375
                  %v377 = vld [vmem:[%s371 + $0x30] sm:$0xff]
                  %378 = vst [vmem:[%s372 + $0x10] sm:$0xff] %v377
                  %v379 = vld [vmem:[%s371 + $0x48] sm:$0xff]
                  %380 = vst [vmem:[%s372 + $0x18] sm:$0xff] %v379
                $region76: #{tpu_custom_call.1} parent=70 // loop_footer
                  %s370 = sadd.s32 1, %s366
                $region77: #{tpu_custom_call.1} parent=70 // loop_footer_branch
                  %365 = sbr.rel target = $region73
                $region78: #{tpu_custom_call.1} parent=70 // loop_exit
                  _
              $region71: #{tpu_custom_call.1} parent=55 // pred_fallthru
                _
              // Predicated region
              $region79: #{tpu_custom_call.1} parent=55 // pred_check
                _
              $region80: #{tpu_custom_call.1} parent=55 // pred_check_branch
                %382 = sbr.rel target = $region82
              $region81: #{tpu_custom_call.1} parent=55 // pred_region
                _
              $region82: #{tpu_custom_call.1} parent=55 // pred_fallthru
                _
            $region56: #{tpu_custom_call.1} parent=51 // pred_fallthru
              _
            // Predicated region
            $region57: #{tpu_custom_call.1} parent=51 // pred_check
              _
            $region58: #{tpu_custom_call.1} parent=51 // pred_check_branch
              %344 = sbr.rel target = $region60
            $region59: #{tpu_custom_call.1} parent=51 // pred_region
              %s346 = ssub.s32 256, 1
              loop: start=0, step=1, limit=1
              $region61: #{tpu_custom_call.1} parent=59 // loop_pre_header
                _
              $region62: #{tpu_custom_call.1} parent=59 // loop_header
                %s348 = sphi 0, %s352
                %p349 = scmp.ge.s32.totalorder %s348, 1
                %s353 = sphi %s338, %s338
                %s354 = sphi %s336, %s336
              $region63: #{tpu_custom_call.1} parent=59 // loop_header_branch
                %351 = sbr.rel (%p349) target = $region67
              $region64: #{tpu_custom_call.1} parent=59 // loop_body
                %v355 = vld [vmem:[%s353] sm:%s346]
                %356 = vst [vmem:[%s354] sm:%s346] %v355
                %v357 = vld [vmem:[%s353 + $0x18] sm:%s346]
                %358 = vst [vmem:[%s354 + $0x8] sm:%s346] %v357
                %v359 = vld [vmem:[%s353 + $0x30] sm:%s346]
                %360 = vst [vmem:[%s354 + $0x10] sm:%s346] %v359
                %v361 = vld [vmem:[%s353 + $0x48] sm:%s346]
                %362 = vst [vmem:[%s354 + $0x18] sm:%s346] %v361
              $region65: #{tpu_custom_call.1} parent=59 // loop_footer
                %s352 = sadd.s32 1, %s348
              $region66: #{tpu_custom_call.1} parent=59 // loop_footer_branch
                %347 = sbr.rel target = $region62
              $region67: #{tpu_custom_call.1} parent=59 // loop_exit
                _
            $region60: #{tpu_custom_call.1} parent=51 // pred_fallthru
              _
          $region52: #{tpu_custom_call.1} parent=47 // pred_fallthru
            _
          %383 = vnop
        $region48: #{tpu_custom_call.1} parent=43 // pred_fallthru
          _
        // Predicated region
        $region83: #{tpu_custom_call.1} parent=43 // pred_check
          %p384 = pneg %p214
        $region84: #{tpu_custom_call.1} parent=43 // pred_check_branch
          %386 = sbr.rel (%p384) target = $region86
        $region85: #{tpu_custom_call.1} parent=43 // pred_region
          %p387 = scmp.lt.s32.totalorder %s21, 2
          %s388 = scalar_select %p387, %s21, 2
          %s389 = scalar_lea.vmem %s8, %s388
        $region86: #{tpu_custom_call.1} parent=43 // pred_fallthru
          _
      $region44: #{tpu_custom_call.1} parent=5 // pred_fallthru
        _
      %p390 = scmp.le.s32.totalorder 1, %s21
      %p391 = scmp.lt.s32.totalorder %s21, 4
      %p392 = pnand %p390, %p391
      %p393 = pneg %p392
      // Predicated region
      $region87: #{tpu_custom_call.1} parent=5 // pred_check
        _
      $region88: #{tpu_custom_call.1} parent=5 // pred_check_branch
        %395 = sbr.rel (%p392) target = $region90
      $region89: #{tpu_custom_call.1} parent=5 // pred_region
        %s396 = ssub.s32 %s21, 1
        // Predicated region
        $region91: #{tpu_custom_call.1} parent=89 // pred_check
          %p397 = pneg %p63
        $region92: #{tpu_custom_call.1} parent=89 // pred_check_branch
          %399 = sbr.rel (%p397) target = $region94
        $region93: #{tpu_custom_call.1} parent=89 // pred_region
          %401 = dma.done [#allocation6], 512
        $region94: #{tpu_custom_call.1} parent=89 // pred_fallthru
          _
        // Predicated region
        $region95: #{tpu_custom_call.1} parent=89 // pred_check
          %p402 = pneg %p84
        $region96: #{tpu_custom_call.1} parent=89 // pred_check_branch
          %404 = sbr.rel (%p402) target = $region98
        $region97: #{tpu_custom_call.1} parent=89 // pred_region
          %406 = dma.done [#allocation9], 512
        $region98: #{tpu_custom_call.1} parent=89 // pred_fallthru
          _
        // Predicated region
        $region99: #{tpu_custom_call.1} parent=89 // pred_check
          %p407 = pneg %p126
        $region100: #{tpu_custom_call.1} parent=89 // pred_check_branch
          %409 = sbr.rel (%p407) target = $region102
        $region101: #{tpu_custom_call.1} parent=89 // pred_region
          %411 = dma.done [#allocation9], 512
        $region102: #{tpu_custom_call.1} parent=89 // pred_fallthru
          _
        // Predicated region
        $region103: #{tpu_custom_call.1} parent=89 // pred_check
          %p412 = pneg %p147
        $region104: #{tpu_custom_call.1} parent=89 // pred_check_branch
          %414 = sbr.rel (%p412) target = $region106
        $region105: #{tpu_custom_call.1} parent=89 // pred_region
          %416 = dma.done [#allocation12], 512
        $region106: #{tpu_custom_call.1} parent=89 // pred_fallthru
          _
        %s417 = sand.u32 %s181, 1
        %s418 = sand.u32 %s181, 1
        %s419 = smul.addr %s418, 32
        %s420 = scalar_lea.vmem [#allocation13], %s419
        // Predicated region
        $region107: #{tpu_custom_call.1} parent=89 // pred_check
          %p421 = pneg %p194
        $region108: #{tpu_custom_call.1} parent=89 // pred_check_branch
          %423 = sbr.rel (%p421) target = $region110
        $region109: #{tpu_custom_call.1} parent=89 // pred_region
          _
        $region110: #{tpu_custom_call.1} parent=89 // pred_fallthru
          _
        %p424 = pneg %p42
        %p425 = pneg %p39
        %p426 = pneg %p63
        %p427 = pneg %p60
        %p428 = pneg %p84
        %p429 = pneg %p81
        %p430 = pneg %p105
        %p431 = pneg %p102
        %p432 = pneg %p126
        %p433 = pneg %p123
        %p434 = pneg %p147
        %p435 = pneg %p144
        %p436 = pneg %p168
        %p437 = pneg %p165
        %s438 = sand.u32 %s181, 1
        %s439 = sand.u32 %s181, 1
        %s440 = smul.addr %s439, 32
        %s441 = scalar_lea.vmem [#allocation13], %s440
        %p442 = pneg %p194
        %p443 = pneg %p191
        %p444 = scmp.lt.s32.totalorder %s26, 2
        %s445 = scalar_select %p444, %s26, 2
        %s446 = scalar_lea.vmem %s8, %s445
        %p447 = pneg %p220
        %p448 = pneg %p217
        %p449 = pneg %p246
        %p450 = pneg %p243
        %s451 = sand.u32 %s233, 1
        %s452 = scalar_lea.sflag [#allocation7], %s451
        %s453 = sand.u32 %s233, 1
        %s454 = smul.addr %s453, 64
        %s455 = scalar_lea.vmem [#allocation14], %s454
        %p456 = scmp.lt.s32.totalorder %s26, 2
        %s457 = scalar_select %p456, %s26, 2
        %s458 = scalar_lea.vmem %s8, %s457
        %v459 = vlaneseq
        %v460 = vand.u32 %v459, 127
        %vm461 = vcmp.ge.s32.totalorder %v460, 64
        %vm462 = vcmp.lt.s32.totalorder %v460, 96
        %vm463 = vmand %vm461, %vm462
        %v464 = vld [vmem:[%s0] sm:$0xff]
        %v465 = vld [vmem:[%s0 + $0x8] sm:$0xff]
        %v466 = vld [vmem:[%s0 + $0x10] sm:$0xff]
        %v467 = vld [vmem:[%s0 + $0x18] sm:$0xff]
        %v468 = vld [vmem:[%s0 + $0x20] sm:$0xff]
        %v469 = vld [vmem:[%s0 + $0x28] sm:$0xff]
        %v470 = vld [vmem:[%s0 + $0x30] sm:$0xff]
        %v471 = vld [vmem:[%s0 + $0x38] sm:$0xff]
        %v472 = vld [vmem:[#allocation5] sm:$0xff]
        %v473 = vld [vmem:[#allocation5 + $0x8] sm:$0xff]
        %v474 = vld [vmem:[#allocation5 + $0x10] sm:$0xff]
        %v475 = vld [vmem:[#allocation5 + $0x18] sm:$0xff]
        %v476 = vld [vmem:[%s3] sm:$0x1]
        %v478 = vperm.slane %v476, 0
        %vm480 = vcmask 261120
        %v482 = vsel %vm480, %v464, 0
        %v485 = vsel %vm480, %v465, 0
        %v488 = vsel %vm480, %v466, 0
        %v491 = vsel %vm480, %v467, 0
        %v494 = vsel %vm480, %v468, 0
        %v497 = vsel %vm480, %v469, 0
        %v500 = vsel %vm480, %v470, 0
        %v503 = vsel %vm480, %v471, 0
        %505 = vmatpush.msra.mxu0 0.0
        %506 = vmatpush.msra.mxu0 0.0
        %507 = vmatpush.msra.mxu0 0.0
        %508 = vmatpush.msra.mxu0 0.0
        %509 = vmatpush.msra.mxu0 0.0
        %510 = vmatpush.msra.mxu0 0.0
        %511 = vmatpush.msra.mxu0 0.0
        %512 = vmatpush.msra.mxu0 0.0
        %513 = vmatpush.msra.mxu0 0.0
        %514 = vmatpush.msra.mxu0 0.0
        %515 = vmatpush.msra.mxu0 0.0
        %516 = vmatpush.msra.mxu0 0.0
        %517 = vmatpush.msra.mxu0 %v475
        %518 = vmatpush.msra.mxu0 %v474
        %519 = vmatpush.msra.mxu0 %v473
        %520 = vmatpush.msra.mxu0 %v472
        %521 = vmatmul.f32.gmra.mxu0 %v482
        %v522 = vpop.f32.mrf.mxu0
        %v523 = vadd.f32 %v478, %v522
        %524 = vmatmul.f32.gmra.mxu0 %v485
        %v525 = vpop.f32.mrf.mxu0
        %v526 = vadd.f32 %v478, %v525
        %527 = vmatmul.f32.gmra.mxu0 %v488
        %v528 = vpop.f32.mrf.mxu0
        %v529 = vadd.f32 %v478, %v528
        %530 = vmatmul.f32.gmra.mxu0 %v491
        %v531 = vpop.f32.mrf.mxu0
        %v532 = vadd.f32 %v478, %v531
        %533 = vmatmul.f32.gmra.mxu0 %v494
        %v534 = vpop.f32.mrf.mxu0
        %v535 = vadd.f32 %v478, %v534
        %536 = vmatmul.f32.gmra.mxu0 %v497
        %v537 = vpop.f32.mrf.mxu0
        %v538 = vadd.f32 %v478, %v537
        %539 = vmatmul.f32.gmra.mxu0 %v500
        %v540 = vpop.f32.mrf.mxu0
        %v541 = vadd.f32 %v478, %v540
        %542 = vmatmul.f32.gmra.mxu0 %v503
        %v543 = vpop.f32.mrf.mxu0
        %v544 = vadd.f32 %v478, %v543
        %545 = vdwg.mxu0
        %546 = vst [vmem:[#allocation2] sm:$0xff] %v523
        %547 = vst [vmem:[#allocation2 + $0x8] sm:$0xff] %v526
        %548 = vst [vmem:[#allocation2 + $0x10] sm:$0xff] %v529
        %549 = vst [vmem:[#allocation2 + $0x18] sm:$0xff] %v532
        %550 = vst [vmem:[#allocation2 + $0x20] sm:$0xff] %v535
        %551 = vst [vmem:[#allocation2 + $0x28] sm:$0xff] %v538
        %552 = vst [vmem:[#allocation2 + $0x30] sm:$0xff] %v541
        %553 = vst [vmem:[#allocation2 + $0x38] sm:$0xff] %v544
        %v554 = vld [vmem:[#allocation8] sm:$0xff]
        %v555 = vld [vmem:[#allocation8 + $0x8] sm:$0xff]
        %v556 = vld [vmem:[#allocation8 + $0x10] sm:$0xff]
        %v557 = vld [vmem:[#allocation8 + $0x18] sm:$0xff]
        %v558 = vld [vmem:[#allocation2] sm:$0xff]
        %v560 = vsel %vm480, 0.0, 0
        %562 = vmatpush.msra.mxu0 0.0
        %563 = vmatpush.msra.mxu0 0.0
        %564 = vmatpush.msra.mxu0 0.0
        %565 = vmatpush.msra.mxu0 0.0
        %566 = vmatpush.msra.mxu0 0.0
        %567 = vmatpush.msra.mxu0 0.0
        %568 = vmatpush.msra.mxu0 0.0
        %569 = vmatpush.msra.mxu0 0.0
        %570 = vmatpush.msra.mxu0 0.0
        %571 = vmatpush.msra.mxu0 0.0
        %572 = vmatpush.msra.mxu0 0.0
        %573 = vmatpush.msra.mxu0 0.0
        %574 = vmatpush.msra.mxu0 %v557
        %575 = vmatpush.msra.mxu0 %v556
        %576 = vmatpush.msra.mxu0 %v555
        %577 = vmatpush.msra.mxu0 %v554
        %578 = vmatmul.f32.gmra.mxu0 %v560
        %v579 = vpop.f32.mrf.mxu0
        %v580 = vadd.f32 0.0, %v579
        %581 = vdwg.mxu0
        %v582 = vadd.f32 %v558, %v580
        %v583 = vtanh.pop %v582
        %v584 = vxor.u32 %v582, 2147483648
        %v585 = vmul.f32 %v584, 1.442695
        %v586 = vpow.pop %v585
        %v587 = vadd.f32 %v586, 1.0
        %v588 = vrcp.pop %v587
        %v589 = vmul.f32 %v587, %v588
        %v590 = vsub.f32 1.0, %v589
        %v591 = vmul.f32 %v588, %v590
        %v592 = vadd.f32 %v588, %v591
        %vm593 = vweird.f32 %v587
        %vm594 = vweird.f32 %v588
        %vm595 = vmor %vm593, %vm594
        %v596 = vsel %vm595, %v588, %v592
        %v597 = vand.u32 2147483647, %v587
        %vm598 = vcmp.eq.f32.partialorder %v597, 8.507059e+37
        %v599 = vand.u32 %v587, 2147483648
        %v600 = vor.u32 1.1754944e-38, %v599
        %v601 = vsel %vm598, %v600, %v596
        %v602 = vmul.f32 1.0, %v601
        %v603 = vsel %vm463, %v583, %v602
        %v604 = vmul.f32 %v603, 0.0
        %606 = vrot.lane.b32.xlu0 %v603, 64
        %v607 = vpop.permute.xlu0 %606
        %v609 = vmul.f32 %v603, %v607
        %611 = vrot.lane.b32.xlu0 %v609, 32
        %v612 = vpop.permute.xlu0 %611
        %v614 = vadd.f32 %v604, %v612
        %v615 = vtanh.pop %v614
        %617 = vrot.lane.b32.xlu0 %v615, 64
        %v618 = vpop.permute.xlu0 %617
        %v620 = vmul.f32 %v603, %v618
        %622 = vrot.lane.b32.xlu0 %v620, 32
        %v623 = vpop.permute.xlu0 %622
        %625 = vst.msk [vmem:[#allocation3] sm:$0xff] %vm480, %v623
        %v626 = vld [vmem:[#allocation2 + $0x8] sm:$0xff]
        %v627 = vsel %vm480, %v623, 0
        %629 = vmatpush.msra.mxu0 0.0
        %630 = vmatpush.msra.mxu0 0.0
        %631 = vmatpush.msra.mxu0 0.0
        %632 = vmatpush.msra.mxu0 0.0
        %633 = vmatpush.msra.mxu0 0.0
        %634 = vmatpush.msra.mxu0 0.0
        %635 = vmatpush.msra.mxu0 0.0
        %636 = vmatpush.msra.mxu0 0.0
        %637 = vmatpush.msra.mxu0 0.0
        %638 = vmatpush.msra.mxu0 0.0
        %639 = vmatpush.msra.mxu0 0.0
        %640 = vmatpush.msra.mxu0 0.0
        %641 = vmatpush.msra.mxu0 %v557
        %642 = vmatpush.msra.mxu0 %v556
        %643 = vmatpush.msra.mxu0 %v555
        %644 = vmatpush.msra.mxu0 %v554
        %645 = vmatmul.f32.gmra.mxu0 %v627
        %v646 = vpop.f32.mrf.mxu0
        %v647 = vadd.f32 0.0, %v646
        %648 = vdwg.mxu0
        %v649 = vadd.f32 %v626, %v647
        %v650 = vtanh.pop %v649
        %v651 = vxor.u32 %v649, 2147483648
        %v652 = vmul.f32 %v651, 1.442695
        %v653 = vpow.pop %v652
        %v654 = vadd.f32 %v653, 1.0
        %v655 = vrcp.pop %v654
        %v656 = vmul.f32 %v654, %v655
        %v657 = vsub.f32 1.0, %v656
        %v658 = vmul.f32 %v655, %v657
        %v659 = vadd.f32 %v655, %v658
        %vm660 = vweird.f32 %v654
        %vm661 = vweird.f32 %v655
        %vm662 = vmor %vm660, %vm661
        %v663 = vsel %vm662, %v655, %v659
        %v664 = vand.u32 2147483647, %v654
        %vm665 = vcmp.eq.f32.partialorder %v664, 8.507059e+37
        %v666 = vand.u32 %v654, 2147483648
        %v667 = vor.u32 1.1754944e-38, %v666
        %v668 = vsel %vm665, %v667, %v663
        %v669 = vmul.f32 1.0, %v668
        %v670 = vsel %vm463, %v650, %v669
        %v671 = vmul.f32 %v670, %v614
        %673 = vrot.lane.b32.xlu0 %v670, 64
        %v674 = vpop.permute.xlu0 %673
        %v676 = vmul.f32 %v670, %v674
        %678 = vrot.lane.b32.xlu0 %v676, 32
        %v679 = vpop.permute.xlu0 %678
        %v681 = vadd.f32 %v671, %v679
        %v682 = vtanh.pop %v681
        %684 = vrot.lane.b32.xlu0 %v682, 64
        %v685 = vpop.permute.xlu0 %684
        %v687 = vmul.f32 %v670, %v685
        %689 = vrot.lane.b32.xlu0 %v687, 32
        %v690 = vpop.permute.xlu0 %689
        %692 = vst.msk [vmem:[#allocation3 + $0x8] sm:$0xff] %vm480, %v690
        %v693 = vld [vmem:[#allocation2 + $0x10] sm:$0xff]
        %v694 = vsel %vm480, %v690, 0
        %696 = vmatpush.msra.mxu0 0.0
        %697 = vmatpush.msra.mxu0 0.0
        %698 = vmatpush.msra.mxu0 0.0
        %699 = vmatpush.msra.mxu0 0.0
        %700 = vmatpush.msra.mxu0 0.0
        %701 = vmatpush.msra.mxu0 0.0
        %702 = vmatpush.msra.mxu0 0.0
        %703 = vmatpush.msra.mxu0 0.0
        %704 = vmatpush.msra.mxu0 0.0
        %705 = vmatpush.msra.mxu0 0.0
        %706 = vmatpush.msra.mxu0 0.0
        %707 = vmatpush.msra.mxu0 0.0
        %708 = vmatpush.msra.mxu0 %v557
        %709 = vmatpush.msra.mxu0 %v556
        %710 = vmatpush.msra.mxu0 %v555
        %711 = vmatpush.msra.mxu0 %v554
        %712 = vmatmul.f32.gmra.mxu0 %v694
        %v713 = vpop.f32.mrf.mxu0
        %v714 = vadd.f32 0.0, %v713
        %715 = vdwg.mxu0
        %v716 = vadd.f32 %v693, %v714
        %v717 = vtanh.pop %v716
        %v718 = vxor.u32 %v716, 2147483648
        %v719 = vmul.f32 %v718, 1.442695
        %v720 = vpow.pop %v719
        %v721 = vadd.f32 %v720, 1.0
        %v722 = vrcp.pop %v721
        %v723 = vmul.f32 %v721, %v722
        %v724 = vsub.f32 1.0, %v723
        %v725 = vmul.f32 %v722, %v724
        %v726 = vadd.f32 %v722, %v725
        %vm727 = vweird.f32 %v721
        %vm728 = vweird.f32 %v722
        %vm729 = vmor %vm727, %vm728
        %v730 = vsel %vm729, %v722, %v726
        %v731 = vand.u32 2147483647, %v721
        %vm732 = vcmp.eq.f32.partialorder %v731, 8.507059e+37
        %v733 = vand.u32 %v721, 2147483648
        %v734 = vor.u32 1.1754944e-38, %v733
        %v735 = vsel %vm732, %v734, %v730
        %v736 = vmul.f32 1.0, %v735
        %v737 = vsel %vm463, %v717, %v736
        %v738 = vmul.f32 %v737, %v681
        %740 = vrot.lane.b32.xlu0 %v737, 64
        %v741 = vpop.permute.xlu0 %740
        %v743 = vmul.f32 %v737, %v741
        %745 = vrot.lane.b32.xlu0 %v743, 32
        %v746 = vpop.permute.xlu0 %745
        %v748 = vadd.f32 %v738, %v746
        %v749 = vtanh.pop %v748
        %751 = vrot.lane.b32.xlu0 %v749, 64
        %v752 = vpop.permute.xlu0 %751
        %v754 = vmul.f32 %v737, %v752
        %756 = vrot.lane.b32.xlu0 %v754, 32
        %v757 = vpop.permute.xlu0 %756
        %759 = vst.msk [vmem:[#allocation3 + $0x10] sm:$0xff] %vm480, %v757
        %v760 = vld [vmem:[#allocation2 + $0x18] sm:$0xff]
        %v761 = vsel %vm480, %v757, 0
        %763 = vmatpush.msra.mxu0 0.0
        %764 = vmatpush.msra.mxu0 0.0
        %765 = vmatpush.msra.mxu0 0.0
        %766 = vmatpush.msra.mxu0 0.0
        %767 = vmatpush.msra.mxu0 0.0
        %768 = vmatpush.msra.mxu0 0.0
        %769 = vmatpush.msra.mxu0 0.0
        %770 = vmatpush.msra.mxu0 0.0
        %771 = vmatpush.msra.mxu0 0.0
        %772 = vmatpush.msra.mxu0 0.0
        %773 = vmatpush.msra.mxu0 0.0
        %774 = vmatpush.msra.mxu0 0.0
        %775 = vmatpush.msra.mxu0 %v557
        %776 = vmatpush.msra.mxu0 %v556
        %777 = vmatpush.msra.mxu0 %v555
        %778 = vmatpush.msra.mxu0 %v554
        %779 = vmatmul.f32.gmra.mxu0 %v761
        %v780 = vpop.f32.mrf.mxu0
        %v781 = vadd.f32 0.0, %v780
        %782 = vdwg.mxu0
        %v783 = vadd.f32 %v760, %v781
        %v784 = vtanh.pop %v783
        %v785 = vxor.u32 %v783, 2147483648
        %v786 = vmul.f32 %v785, 1.442695
        %v787 = vpow.pop %v786
        %v788 = vadd.f32 %v787, 1.0
        %v789 = vrcp.pop %v788
        %v790 = vmul.f32 %v788, %v789
        %v791 = vsub.f32 1.0, %v790
        %v792 = vmul.f32 %v789, %v791
        %v793 = vadd.f32 %v789, %v792
        %vm794 = vweird.f32 %v788
        %vm795 = vweird.f32 %v789
        %vm796 = vmor %vm794, %vm795
        %v797 = vsel %vm796, %v789, %v793
        %v798 = vand.u32 2147483647, %v788
        %vm799 = vcmp.eq.f32.partialorder %v798, 8.507059e+37
        %v800 = vand.u32 %v788, 2147483648
        %v801 = vor.u32 1.1754944e-38, %v800
        %v802 = vsel %vm799, %v801, %v797
        %v803 = vmul.f32 1.0, %v802
        %v804 = vsel %vm463, %v784, %v803
        %v805 = vmul.f32 %v804, %v748
        %807 = vrot.lane.b32.xlu0 %v804, 64
        %v808 = vpop.permute.xlu0 %807
        %v810 = vmul.f32 %v804, %v808
        %812 = vrot.lane.b32.xlu0 %v810, 32
        %v813 = vpop.permute.xlu0 %812
        %v815 = vadd.f32 %v805, %v813
        %v816 = vtanh.pop %v815
        %818 = vrot.lane.b32.xlu0 %v816, 64
        %v819 = vpop.permute.xlu0 %818
        %v821 = vmul.f32 %v804, %v819
        %823 = vrot.lane.b32.xlu0 %v821, 32
        %v824 = vpop.permute.xlu0 %823
        %826 = vst.msk [vmem:[#allocation3 + $0x18] sm:$0xff] %vm480, %v824
        %v827 = vld [vmem:[#allocation2 + $0x20] sm:$0xff]
        %v828 = vsel %vm480, %v824, 0
        %830 = vmatpush.msra.mxu0 0.0
        %831 = vmatpush.msra.mxu0 0.0
        %832 = vmatpush.msra.mxu0 0.0
        %833 = vmatpush.msra.mxu0 0.0
        %834 = vmatpush.msra.mxu0 0.0
        %835 = vmatpush.msra.mxu0 0.0
        %836 = vmatpush.msra.mxu0 0.0
        %837 = vmatpush.msra.mxu0 0.0
        %838 = vmatpush.msra.mxu0 0.0
        %839 = vmatpush.msra.mxu0 0.0
        %840 = vmatpush.msra.mxu0 0.0
        %841 = vmatpush.msra.mxu0 0.0
        %842 = vmatpush.msra.mxu0 %v557
        %843 = vmatpush.msra.mxu0 %v556
        %844 = vmatpush.msra.mxu0 %v555
        %845 = vmatpush.msra.mxu0 %v554
        %846 = vmatmul.f32.gmra.mxu0 %v828
        %v847 = vpop.f32.mrf.mxu0
        %v848 = vadd.f32 0.0, %v847
        %849 = vdwg.mxu0
        %v850 = vadd.f32 %v827, %v848
        %v851 = vtanh.pop %v850
        %v852 = vxor.u32 %v850, 2147483648
        %v853 = vmul.f32 %v852, 1.442695
        %v854 = vpow.pop %v853
        %v855 = vadd.f32 %v854, 1.0
        %v856 = vrcp.pop %v855
        %v857 = vmul.f32 %v855, %v856
        %v858 = vsub.f32 1.0, %v857
        %v859 = vmul.f32 %v856, %v858
        %v860 = vadd.f32 %v856, %v859
        %vm861 = vweird.f32 %v855
        %vm862 = vweird.f32 %v856
        %vm863 = vmor %vm861, %vm862
        %v864 = vsel %vm863, %v856, %v860
        %v865 = vand.u32 2147483647, %v855
        %vm866 = vcmp.eq.f32.partialorder %v865, 8.507059e+37
        %v867 = vand.u32 %v855, 2147483648
        %v868 = vor.u32 1.1754944e-38, %v867
        %v869 = vsel %vm866, %v868, %v864
        %v870 = vmul.f32 1.0, %v869
        %v871 = vsel %vm463, %v851, %v870
        %v872 = vmul.f32 %v871, %v815
        %874 = vrot.lane.b32.xlu0 %v871, 64
        %v875 = vpop.permute.xlu0 %874
        %v877 = vmul.f32 %v871, %v875
        %879 = vrot.lane.b32.xlu0 %v877, 32
        %v880 = vpop.permute.xlu0 %879
        %v882 = vadd.f32 %v872, %v880
        %v883 = vtanh.pop %v882
        %885 = vrot.lane.b32.xlu0 %v883, 64
        %v886 = vpop.permute.xlu0 %885
        %v888 = vmul.f32 %v871, %v886
        %890 = vrot.lane.b32.xlu0 %v888, 32
        %v891 = vpop.permute.xlu0 %890
        %893 = vst.msk [vmem:[#allocation3 + $0x20] sm:$0xff] %vm480, %v891
        %v894 = vld [vmem:[#allocation2 + $0x28] sm:$0xff]
        %v895 = vsel %vm480, %v891, 0
        %897 = vmatpush.msra.mxu0 0.0
        %898 = vmatpush.msra.mxu0 0.0
        %899 = vmatpush.msra.mxu0 0.0
        %900 = vmatpush.msra.mxu0 0.0
        %901 = vmatpush.msra.mxu0 0.0
        %902 = vmatpush.msra.mxu0 0.0
        %903 = vmatpush.msra.mxu0 0.0
        %904 = vmatpush.msra.mxu0 0.0
        %905 = vmatpush.msra.mxu0 0.0
        %906 = vmatpush.msra.mxu0 0.0
        %907 = vmatpush.msra.mxu0 0.0
        %908 = vmatpush.msra.mxu0 0.0
        %909 = vmatpush.msra.mxu0 %v557
        %910 = vmatpush.msra.mxu0 %v556
        %911 = vmatpush.msra.mxu0 %v555
        %912 = vmatpush.msra.mxu0 %v554
        %913 = vmatmul.f32.gmra.mxu0 %v895
        %v914 = vpop.f32.mrf.mxu0
        %v915 = vadd.f32 0.0, %v914
        %916 = vdwg.mxu0
        %v917 = vadd.f32 %v894, %v915
        %v918 = vtanh.pop %v917
        %v919 = vxor.u32 %v917, 2147483648
        %v920 = vmul.f32 %v919, 1.442695
        %v921 = vpow.pop %v920
        %v922 = vadd.f32 %v921, 1.0
        %v923 = vrcp.pop %v922
        %v924 = vmul.f32 %v922, %v923
        %v925 = vsub.f32 1.0, %v924
        %v926 = vmul.f32 %v923, %v925
        %v927 = vadd.f32 %v923, %v926
        %vm928 = vweird.f32 %v922
        %vm929 = vweird.f32 %v923
        %vm930 = vmor %vm928, %vm929
        %v931 = vsel %vm930, %v923, %v927
        %v932 = vand.u32 2147483647, %v922
        %vm933 = vcmp.eq.f32.partialorder %v932, 8.507059e+37
        %v934 = vand.u32 %v922, 2147483648
        %v935 = vor.u32 1.1754944e-38, %v934
        %v936 = vsel %vm933, %v935, %v931
        %v937 = vmul.f32 1.0, %v936
        %v938 = vsel %vm463, %v918, %v937
        %v939 = vmul.f32 %v938, %v882
        %941 = vrot.lane.b32.xlu0 %v938, 64
        %v942 = vpop.permute.xlu0 %941
        %v944 = vmul.f32 %v938, %v942
        %946 = vrot.lane.b32.xlu0 %v944, 32
        %v947 = vpop.permute.xlu0 %946
        %v949 = vadd.f32 %v939, %v947
        %v950 = vtanh.pop %v949
        %952 = vrot.lane.b32.xlu0 %v950, 64
        %v953 = vpop.permute.xlu0 %952
        %v955 = vmul.f32 %v938, %v953
        %957 = vrot.lane.b32.xlu0 %v955, 32
        %v958 = vpop.permute.xlu0 %957
        %960 = vst.msk [vmem:[#allocation3 + $0x28] sm:$0xff] %vm480, %v958
        %v961 = vld [vmem:[#allocation2 + $0x30] sm:$0xff]
        %v962 = vsel %vm480, %v958, 0
        %964 = vmatpush.msra.mxu0 0.0
        %965 = vmatpush.msra.mxu0 0.0
        %966 = vmatpush.msra.mxu0 0.0
        %967 = vmatpush.msra.mxu0 0.0
        %968 = vmatpush.msra.mxu0 0.0
        %969 = vmatpush.msra.mxu0 0.0
        %970 = vmatpush.msra.mxu0 0.0
        %971 = vmatpush.msra.mxu0 0.0
        %972 = vmatpush.msra.mxu0 0.0
        %973 = vmatpush.msra.mxu0 0.0
        %974 = vmatpush.msra.mxu0 0.0
        %975 = vmatpush.msra.mxu0 0.0
        %976 = vmatpush.msra.mxu0 %v557
        %977 = vmatpush.msra.mxu0 %v556
        %978 = vmatpush.msra.mxu0 %v555
        %979 = vmatpush.msra.mxu0 %v554
        %980 = vmatmul.f32.gmra.mxu0 %v962
        %v981 = vpop.f32.mrf.mxu0
        %v982 = vadd.f32 0.0, %v981
        %983 = vdwg.mxu0
        %v984 = vadd.f32 %v961, %v982
        %v985 = vtanh.pop %v984
        %v986 = vxor.u32 %v984, 2147483648
        %v987 = vmul.f32 %v986, 1.442695
        %v988 = vpow.pop %v987
        %v989 = vadd.f32 %v988, 1.0
        %v990 = vrcp.pop %v989
        %v991 = vmul.f32 %v989, %v990
        %v992 = vsub.f32 1.0, %v991
        %v993 = vmul.f32 %v990, %v992
        %v994 = vadd.f32 %v990, %v993
        %vm995 = vweird.f32 %v989
        %vm996 = vweird.f32 %v990
        %vm997 = vmor %vm995, %vm996
        %v998 = vsel %vm997, %v990, %v994
        %v999 = vand.u32 2147483647, %v989
        %vm1000 = vcmp.eq.f32.partialorder %v999, 8.507059e+37
        %v1001 = vand.u32 %v989, 2147483648
        %v1002 = vor.u32 1.1754944e-38, %v1001
        %v1003 = vsel %vm1000, %v1002, %v998
        %v1004 = vmul.f32 1.0, %v1003
        %v1005 = vsel %vm463, %v985, %v1004
        %v1006 = vmul.f32 %v1005, %v949
        %1008 = vrot.lane.b32.xlu0 %v1005, 64
        %v1009 = vpop.permute.xlu0 %1008
        %v1011 = vmul.f32 %v1005, %v1009
        %1013 = vrot.lane.b32.xlu0 %v1011, 32
        %v1014 = vpop.permute.xlu0 %1013
        %v1016 = vadd.f32 %v1006, %v1014
        %v1017 = vtanh.pop %v1016
        %1019 = vrot.lane.b32.xlu0 %v1017, 64
        %v1020 = vpop.permute.xlu0 %1019
        %v1022 = vmul.f32 %v1005, %v1020
        %1024 = vrot.lane.b32.xlu0 %v1022, 32
        %v1025 = vpop.permute.xlu0 %1024
        %1027 = vst.msk [vmem:[#allocation3 + $0x30] sm:$0xff] %vm480, %v1025
        %v1028 = vld [vmem:[#allocation2 + $0x38] sm:$0xff]
        %v1029 = vsel %vm480, %v1025, 0
        %1031 = vmatpush.msra.mxu0 0.0
        %1032 = vmatpush.msra.mxu0 0.0
        %1033 = vmatpush.msra.mxu0 0.0
        %1034 = vmatpush.msra.mxu0 0.0
        %1035 = vmatpush.msra.mxu0 0.0
        %1036 = vmatpush.msra.mxu0 0.0
        %1037 = vmatpush.msra.mxu0 0.0
        %1038 = vmatpush.msra.mxu0 0.0
        %1039 = vmatpush.msra.mxu0 0.0
        %1040 = vmatpush.msra.mxu0 0.0
        %1041 = vmatpush.msra.mxu0 0.0
        %1042 = vmatpush.msra.mxu0 0.0
        %1043 = vmatpush.msra.mxu0 %v557
        %1044 = vmatpush.msra.mxu0 %v556
        %1045 = vmatpush.msra.mxu0 %v555
        %1046 = vmatpush.msra.mxu0 %v554
        %1047 = vmatmul.f32.gmra.mxu0 %v1029
        %v1048 = vpop.f32.mrf.mxu0
        %v1049 = vadd.f32 0.0, %v1048
        %1050 = vdwg.mxu0
        %v1051 = vadd.f32 %v1028, %v1049
        %v1052 = vtanh.pop %v1051
        %v1053 = vxor.u32 %v1051, 2147483648
        %v1054 = vmul.f32 %v1053, 1.442695
        %v1055 = vpow.pop %v1054
        %v1056 = vadd.f32 %v1055, 1.0
        %v1057 = vrcp.pop %v1056
        %v1058 = vmul.f32 %v1056, %v1057
        %v1059 = vsub.f32 1.0, %v1058
        %v1060 = vmul.f32 %v1057, %v1059
        %v1061 = vadd.f32 %v1057, %v1060
        %vm1062 = vweird.f32 %v1056
        %vm1063 = vweird.f32 %v1057
        %vm1064 = vmor %vm1062, %vm1063
        %v1065 = vsel %vm1064, %v1057, %v1061
        %v1066 = vand.u32 2147483647, %v1056
        %vm1067 = vcmp.eq.f32.partialorder %v1066, 8.507059e+37
        %v1068 = vand.u32 %v1056, 2147483648
        %v1069 = vor.u32 1.1754944e-38, %v1068
        %v1070 = vsel %vm1067, %v1069, %v1065
        %v1071 = vmul.f32 1.0, %v1070
        %v1072 = vsel %vm463, %v1052, %v1071
        %v1073 = vmul.f32 %v1072, %v1016
        %1075 = vrot.lane.b32.xlu0 %v1072, 64
        %v1076 = vpop.permute.xlu0 %1075
        %v1078 = vmul.f32 %v1072, %v1076
        %1080 = vrot.lane.b32.xlu0 %v1078, 32
        %v1081 = vpop.permute.xlu0 %1080
        %v1083 = vadd.f32 %v1073, %v1081
        %v1084 = vtanh.pop %v1083
        %1086 = vrot.lane.b32.xlu0 %v1084, 64
        %v1087 = vpop.permute.xlu0 %1086
        %v1089 = vmul.f32 %v1072, %v1087
        %1091 = vrot.lane.b32.xlu0 %v1089, 32
        %v1092 = vpop.permute.xlu0 %1091
        %1094 = vst.msk [vmem:[#allocation3 + $0x38] sm:$0xff] %vm480, %v1092
        %v1095 = vld [vmem:[#allocation3] sm:$0xff]
        %v1096 = vld [vmem:[#allocation3 + $0x8] sm:$0xff]
        %v1097 = vld [vmem:[#allocation3 + $0x10] sm:$0xff]
        %v1098 = vld [vmem:[#allocation3 + $0x18] sm:$0xff]
        %v1099 = vld [vmem:[#allocation3 + $0x20] sm:$0xff]
        %v1100 = vld [vmem:[#allocation3 + $0x28] sm:$0xff]
        %v1101 = vld [vmem:[#allocation3 + $0x30] sm:$0xff]
        %v1102 = vld [vmem:[#allocation3 + $0x38] sm:$0xff]
        %v1103 = vld [vmem:[#allocation10] sm:$0xff]
        %v1104 = vld [vmem:[#allocation10 + $0x8] sm:$0xff]
        %v1105 = vld [vmem:[#allocation10 + $0x10] sm:$0xff]
        %v1106 = vld [vmem:[#allocation10 + $0x18] sm:$0xff]
        %v1107 = vld [vmem:[%s6] sm:$0x1]
        %v1109 = vperm.slane %v1107, 0
        %v1112 = vsel %vm480, %v1095, 0
        %v1115 = vsel %vm480, %v1096, 0
        %v1118 = vsel %vm480, %v1097, 0
        %v1121 = vsel %vm480, %v1098, 0
        %v1124 = vsel %vm480, %v1099, 0
        %v1127 = vsel %vm480, %v1100, 0
        %v1130 = vsel %vm480, %v1101, 0
        %v1133 = vsel %vm480, %v1102, 0
        %1135 = vmatpush.msra.mxu0 0.0
        %1136 = vmatpush.msra.mxu0 0.0
        %1137 = vmatpush.msra.mxu0 0.0
        %1138 = vmatpush.msra.mxu0 0.0
        %1139 = vmatpush.msra.mxu0 0.0
        %1140 = vmatpush.msra.mxu0 0.0
        %1141 = vmatpush.msra.mxu0 0.0
        %1142 = vmatpush.msra.mxu0 0.0
        %1143 = vmatpush.msra.mxu0 0.0
        %1144 = vmatpush.msra.mxu0 0.0
        %1145 = vmatpush.msra.mxu0 0.0
        %1146 = vmatpush.msra.mxu0 0.0
        %1147 = vmatpush.msra.mxu0 %v1106
        %1148 = vmatpush.msra.mxu0 %v1105
        %1149 = vmatpush.msra.mxu0 %v1104
        %1150 = vmatpush.msra.mxu0 %v1103
        %1151 = vmatmul.f32.gmra.mxu0 %v1112
        %v1152 = vpop.f32.mrf.mxu0
        %v1153 = vadd.f32 %v1109, %v1152
        %1154 = vmatmul.f32.gmra.mxu0 %v1115
        %v1155 = vpop.f32.mrf.mxu0
        %v1156 = vadd.f32 %v1109, %v1155
        %1157 = vmatmul.f32.gmra.mxu0 %v1118
        %v1158 = vpop.f32.mrf.mxu0
        %v1159 = vadd.f32 %v1109, %v1158
        %1160 = vmatmul.f32.gmra.mxu0 %v1121
        %v1161 = vpop.f32.mrf.mxu0
        %v1162 = vadd.f32 %v1109, %v1161
        %1163 = vmatmul.f32.gmra.mxu0 %v1124
        %v1164 = vpop.f32.mrf.mxu0
        %v1165 = vadd.f32 %v1109, %v1164
        %1166 = vmatmul.f32.gmra.mxu0 %v1127
        %v1167 = vpop.f32.mrf.mxu0
        %v1168 = vadd.f32 %v1109, %v1167
        %1169 = vmatmul.f32.gmra.mxu0 %v1130
        %v1170 = vpop.f32.mrf.mxu0
        %v1171 = vadd.f32 %v1109, %v1170
        %1172 = vmatmul.f32.gmra.mxu0 %v1133
        %v1173 = vpop.f32.mrf.mxu0
        %v1174 = vadd.f32 %v1109, %v1173
        %1175 = vdwg.mxu0
        %1176 = vst [vmem:[#allocation2] sm:$0xff] %v1153
        %1177 = vst [vmem:[#allocation2 + $0x8] sm:$0xff] %v1156
        %1178 = vst [vmem:[#allocation2 + $0x10] sm:$0xff] %v1159
        %1179 = vst [vmem:[#allocation2 + $0x18] sm:$0xff] %v1162
        %1180 = vst [vmem:[#allocation2 + $0x20] sm:$0xff] %v1165
        %1181 = vst [vmem:[#allocation2 + $0x28] sm:$0xff] %v1168
        %1182 = vst [vmem:[#allocation2 + $0x30] sm:$0xff] %v1171
        %1183 = vst [vmem:[#allocation2 + $0x38] sm:$0xff] %v1174
        %v1184 = vld [vmem:[#allocation11] sm:$0xff]
        %v1185 = vld [vmem:[#allocation11 + $0x8] sm:$0xff]
        %v1186 = vld [vmem:[#allocation11 + $0x10] sm:$0xff]
        %v1187 = vld [vmem:[#allocation11 + $0x18] sm:$0xff]
        %v1188 = vld [vmem:[#allocation2] sm:$0xff]
        %1189 = vmatpush.msra.mxu0 0.0
        %1190 = vmatpush.msra.mxu0 0.0
        %1191 = vmatpush.msra.mxu0 0.0
        %1192 = vmatpush.msra.mxu0 0.0
        %1193 = vmatpush.msra.mxu0 0.0
        %1194 = vmatpush.msra.mxu0 0.0
        %1195 = vmatpush.msra.mxu0 0.0
        %1196 = vmatpush.msra.mxu0 0.0
        %1197 = vmatpush.msra.mxu0 0.0
        %1198 = vmatpush.msra.mxu0 0.0
        %1199 = vmatpush.msra.mxu0 0.0
        %1200 = vmatpush.msra.mxu0 0.0
        %1201 = vmatpush.msra.mxu0 %v1187
        %1202 = vmatpush.msra.mxu0 %v1186
        %1203 = vmatpush.msra.mxu0 %v1185
        %1204 = vmatpush.msra.mxu0 %v1184
        %1205 = vmatmul.f32.gmra.mxu0 %v560
        %v1206 = vpop.f32.mrf.mxu0
        %v1207 = vadd.f32 0.0, %v1206
        %1208 = vdwg.mxu0
        %v1209 = vadd.f32 %v1188, %v1207
        %v1210 = vtanh.pop %v1209
        %v1211 = vxor.u32 %v1209, 2147483648
        %v1212 = vmul.f32 %v1211, 1.442695
        %v1213 = vpow.pop %v1212
        %v1214 = vadd.f32 %v1213, 1.0
        %v1215 = vrcp.pop %v1214
        %v1216 = vmul.f32 %v1214, %v1215
        %v1217 = vsub.f32 1.0, %v1216
        %v1218 = vmul.f32 %v1215, %v1217
        %v1219 = vadd.f32 %v1215, %v1218
        %vm1220 = vweird.f32 %v1214
        %vm1221 = vweird.f32 %v1215
        %vm1222 = vmor %vm1220, %vm1221
        %v1223 = vsel %vm1222, %v1215, %v1219
        %v1224 = vand.u32 2147483647, %v1214
        %vm1225 = vcmp.eq.f32.partialorder %v1224, 8.507059e+37
        %v1226 = vand.u32 %v1214, 2147483648
        %v1227 = vor.u32 1.1754944e-38, %v1226
        %v1228 = vsel %vm1225, %v1227, %v1223
        %v1229 = vmul.f32 1.0, %v1228
        %v1230 = vsel %vm463, %v1210, %v1229
        %v1231 = vmul.f32 %v1230, 0.0
        %1233 = vrot.lane.b32.xlu0 %v1230, 64
        %v1234 = vpop.permute.xlu0 %1233
        %v1236 = vmul.f32 %v1230, %v1234
        %1238 = vrot.lane.b32.xlu0 %v1236, 32
        %v1239 = vpop.permute.xlu0 %1238
        %v1241 = vadd.f32 %v1231, %v1239
        %v1242 = vtanh.pop %v1241
        %1244 = vrot.lane.b32.xlu0 %v1242, 64
        %v1245 = vpop.permute.xlu0 %1244
        %v1247 = vmul.f32 %v1230, %v1245
        %1249 = vrot.lane.b32.xlu0 %v1247, 32
        %v1250 = vpop.permute.xlu0 %1249
        %1252 = vst.msk [vmem:[#allocation4] sm:$0xff] %vm480, %v1250
        %v1253 = vld [vmem:[#allocation2 + $0x8] sm:$0xff]
        %v1254 = vsel %vm480, %v1250, 0
        %1256 = vmatpush.msra.mxu0 0.0
        %1257 = vmatpush.msra.mxu0 0.0
        %1258 = vmatpush.msra.mxu0 0.0
        %1259 = vmatpush.msra.mxu0 0.0
        %1260 = vmatpush.msra.mxu0 0.0
        %1261 = vmatpush.msra.mxu0 0.0
        %1262 = vmatpush.msra.mxu0 0.0
        %1263 = vmatpush.msra.mxu0 0.0
        %1264 = vmatpush.msra.mxu0 0.0
        %1265 = vmatpush.msra.mxu0 0.0
        %1266 = vmatpush.msra.mxu0 0.0
        %1267 = vmatpush.msra.mxu0 0.0
        %1268 = vmatpush.msra.mxu0 %v1187
        %1269 = vmatpush.msra.mxu0 %v1186
        %1270 = vmatpush.msra.mxu0 %v1185
        %1271 = vmatpush.msra.mxu0 %v1184
        %1272 = vmatmul.f32.gmra.mxu0 %v1254
        %v1273 = vpop.f32.mrf.mxu0
        %v1274 = vadd.f32 0.0, %v1273
        %1275 = vdwg.mxu0
        %v1276 = vadd.f32 %v1253, %v1274
        %v1277 = vtanh.pop %v1276
        %v1278 = vxor.u32 %v1276, 2147483648
        %v1279 = vmul.f32 %v1278, 1.442695
        %v1280 = vpow.pop %v1279
        %v1281 = vadd.f32 %v1280, 1.0
        %v1282 = vrcp.pop %v1281
        %v1283 = vmul.f32 %v1281, %v1282
        %v1284 = vsub.f32 1.0, %v1283
        %v1285 = vmul.f32 %v1282, %v1284
        %v1286 = vadd.f32 %v1282, %v1285
        %vm1287 = vweird.f32 %v1281
        %vm1288 = vweird.f32 %v1282
        %vm1289 = vmor %vm1287, %vm1288
        %v1290 = vsel %vm1289, %v1282, %v1286
        %v1291 = vand.u32 2147483647, %v1281
        %vm1292 = vcmp.eq.f32.partialorder %v1291, 8.507059e+37
        %v1293 = vand.u32 %v1281, 2147483648
        %v1294 = vor.u32 1.1754944e-38, %v1293
        %v1295 = vsel %vm1292, %v1294, %v1290
        %v1296 = vmul.f32 1.0, %v1295
        %v1297 = vsel %vm463, %v1277, %v1296
        %v1298 = vmul.f32 %v1297, %v1241
        %1300 = vrot.lane.b32.xlu0 %v1297, 64
        %v1301 = vpop.permute.xlu0 %1300
        %v1303 = vmul.f32 %v1297, %v1301
        %1305 = vrot.lane.b32.xlu0 %v1303, 32
        %v1306 = vpop.permute.xlu0 %1305
        %v1308 = vadd.f32 %v1298, %v1306
        %v1309 = vtanh.pop %v1308
        %1311 = vrot.lane.b32.xlu0 %v1309, 64
        %v1312 = vpop.permute.xlu0 %1311
        %v1314 = vmul.f32 %v1297, %v1312
        %1316 = vrot.lane.b32.xlu0 %v1314, 32
        %v1317 = vpop.permute.xlu0 %1316
        %1319 = vst.msk [vmem:[#allocation4 + $0x8] sm:$0xff] %vm480, %v1317
        %v1320 = vld [vmem:[#allocation2 + $0x10] sm:$0xff]
        %v1321 = vsel %vm480, %v1317, 0
        %1323 = vmatpush.msra.mxu0 0.0
        %1324 = vmatpush.msra.mxu0 0.0
        %1325 = vmatpush.msra.mxu0 0.0
        %1326 = vmatpush.msra.mxu0 0.0
        %1327 = vmatpush.msra.mxu0 0.0
        %1328 = vmatpush.msra.mxu0 0.0
        %1329 = vmatpush.msra.mxu0 0.0
        %1330 = vmatpush.msra.mxu0 0.0
        %1331 = vmatpush.msra.mxu0 0.0
        %1332 = vmatpush.msra.mxu0 0.0
        %1333 = vmatpush.msra.mxu0 0.0
        %1334 = vmatpush.msra.mxu0 0.0
        %1335 = vmatpush.msra.mxu0 %v1187
        %1336 = vmatpush.msra.mxu0 %v1186
        %1337 = vmatpush.msra.mxu0 %v1185
        %1338 = vmatpush.msra.mxu0 %v1184
        %1339 = vmatmul.f32.gmra.mxu0 %v1321
        %v1340 = vpop.f32.mrf.mxu0
        %v1341 = vadd.f32 0.0, %v1340
        %1342 = vdwg.mxu0
        %v1343 = vadd.f32 %v1320, %v1341
        %v1344 = vtanh.pop %v1343
        %v1345 = vxor.u32 %v1343, 2147483648
        %v1346 = vmul.f32 %v1345, 1.442695
        %v1347 = vpow.pop %v1346
        %v1348 = vadd.f32 %v1347, 1.0
        %v1349 = vrcp.pop %v1348
        %v1350 = vmul.f32 %v1348, %v1349
        %v1351 = vsub.f32 1.0, %v1350
        %v1352 = vmul.f32 %v1349, %v1351
        %v1353 = vadd.f32 %v1349, %v1352
        %vm1354 = vweird.f32 %v1348
        %vm1355 = vweird.f32 %v1349
        %vm1356 = vmor %vm1354, %vm1355
        %v1357 = vsel %vm1356, %v1349, %v1353
        %v1358 = vand.u32 2147483647, %v1348
        %vm1359 = vcmp.eq.f32.partialorder %v1358, 8.507059e+37
        %v1360 = vand.u32 %v1348, 2147483648
        %v1361 = vor.u32 1.1754944e-38, %v1360
        %v1362 = vsel %vm1359, %v1361, %v1357
        %v1363 = vmul.f32 1.0, %v1362
        %v1364 = vsel %vm463, %v1344, %v1363
        %v1365 = vmul.f32 %v1364, %v1308
        %1367 = vrot.lane.b32.xlu0 %v1364, 64
        %v1368 = vpop.permute.xlu0 %1367
        %v1370 = vmul.f32 %v1364, %v1368
        %1372 = vrot.lane.b32.xlu0 %v1370, 32
        %v1373 = vpop.permute.xlu0 %1372
        %v1375 = vadd.f32 %v1365, %v1373
        %v1376 = vtanh.pop %v1375
        %1378 = vrot.lane.b32.xlu0 %v1376, 64
        %v1379 = vpop.permute.xlu0 %1378
        %v1381 = vmul.f32 %v1364, %v1379
        %1383 = vrot.lane.b32.xlu0 %v1381, 32
        %v1384 = vpop.permute.xlu0 %1383
        %1386 = vst.msk [vmem:[#allocation4 + $0x10] sm:$0xff] %vm480, %v1384
        %v1387 = vld [vmem:[#allocation2 + $0x18] sm:$0xff]
        %v1388 = vsel %vm480, %v1384, 0
        %1390 = vmatpush.msra.mxu0 0.0
        %1391 = vmatpush.msra.mxu0 0.0
        %1392 = vmatpush.msra.mxu0 0.0
        %1393 = vmatpush.msra.mxu0 0.0
        %1394 = vmatpush.msra.mxu0 0.0
        %1395 = vmatpush.msra.mxu0 0.0
        %1396 = vmatpush.msra.mxu0 0.0
        %1397 = vmatpush.msra.mxu0 0.0
        %1398 = vmatpush.msra.mxu0 0.0
        %1399 = vmatpush.msra.mxu0 0.0
        %1400 = vmatpush.msra.mxu0 0.0
        %1401 = vmatpush.msra.mxu0 0.0
        %1402 = vmatpush.msra.mxu0 %v1187
        %1403 = vmatpush.msra.mxu0 %v1186
        %1404 = vmatpush.msra.mxu0 %v1185
        %1405 = vmatpush.msra.mxu0 %v1184
        %1406 = vmatmul.f32.gmra.mxu0 %v1388
        %v1407 = vpop.f32.mrf.mxu0
        %v1408 = vadd.f32 0.0, %v1407
        %1409 = vdwg.mxu0
        %v1410 = vadd.f32 %v1387, %v1408
        %v1411 = vtanh.pop %v1410
        %v1412 = vxor.u32 %v1410, 2147483648
        %v1413 = vmul.f32 %v1412, 1.442695
        %v1414 = vpow.pop %v1413
        %v1415 = vadd.f32 %v1414, 1.0
        %v1416 = vrcp.pop %v1415
        %v1417 = vmul.f32 %v1415, %v1416
        %v1418 = vsub.f32 1.0, %v1417
        %v1419 = vmul.f32 %v1416, %v1418
        %v1420 = vadd.f32 %v1416, %v1419
        %vm1421 = vweird.f32 %v1415
        %vm1422 = vweird.f32 %v1416
        %vm1423 = vmor %vm1421, %vm1422
        %v1424 = vsel %vm1423, %v1416, %v1420
        %v1425 = vand.u32 2147483647, %v1415
        %vm1426 = vcmp.eq.f32.partialorder %v1425, 8.507059e+37
        %v1427 = vand.u32 %v1415, 2147483648
        %v1428 = vor.u32 1.1754944e-38, %v1427
        %v1429 = vsel %vm1426, %v1428, %v1424
        %v1430 = vmul.f32 1.0, %v1429
        %v1431 = vsel %vm463, %v1411, %v1430
        %v1432 = vmul.f32 %v1431, %v1375
        %1434 = vrot.lane.b32.xlu0 %v1431, 64
        %v1435 = vpop.permute.xlu0 %1434
        %v1437 = vmul.f32 %v1431, %v1435
        %1439 = vrot.lane.b32.xlu0 %v1437, 32
        %v1440 = vpop.permute.xlu0 %1439
        %v1442 = vadd.f32 %v1432, %v1440
        %v1443 = vtanh.pop %v1442
        %1445 = vrot.lane.b32.xlu0 %v1443, 64
        %v1446 = vpop.permute.xlu0 %1445
        %v1448 = vmul.f32 %v1431, %v1446
        %1450 = vrot.lane.b32.xlu0 %v1448, 32
        %v1451 = vpop.permute.xlu0 %1450
        %1453 = vst.msk [vmem:[#allocation4 + $0x18] sm:$0xff] %vm480, %v1451
        %v1454 = vld [vmem:[#allocation2 + $0x20] sm:$0xff]
        %v1455 = vsel %vm480, %v1451, 0
        %1457 = vmatpush.msra.mxu0 0.0
        %1458 = vmatpush.msra.mxu0 0.0
        %1459 = vmatpush.msra.mxu0 0.0
        %1460 = vmatpush.msra.mxu0 0.0
        %1461 = vmatpush.msra.mxu0 0.0
        %1462 = vmatpush.msra.mxu0 0.0
        %1463 = vmatpush.msra.mxu0 0.0
        %1464 = vmatpush.msra.mxu0 0.0
        %1465 = vmatpush.msra.mxu0 0.0
        %1466 = vmatpush.msra.mxu0 0.0
        %1467 = vmatpush.msra.mxu0 0.0
        %1468 = vmatpush.msra.mxu0 0.0
        %1469 = vmatpush.msra.mxu0 %v1187
        %1470 = vmatpush.msra.mxu0 %v1186
        %1471 = vmatpush.msra.mxu0 %v1185
        %1472 = vmatpush.msra.mxu0 %v1184
        %1473 = vmatmul.f32.gmra.mxu0 %v1455
        %v1474 = vpop.f32.mrf.mxu0
        %v1475 = vadd.f32 0.0, %v1474
        %1476 = vdwg.mxu0
        %v1477 = vadd.f32 %v1454, %v1475
        %v1478 = vtanh.pop %v1477
        %v1479 = vxor.u32 %v1477, 2147483648
        %v1480 = vmul.f32 %v1479, 1.442695
        %v1481 = vpow.pop %v1480
        %v1482 = vadd.f32 %v1481, 1.0
        %v1483 = vrcp.pop %v1482
        %v1484 = vmul.f32 %v1482, %v1483
        %v1485 = vsub.f32 1.0, %v1484
        %v1486 = vmul.f32 %v1483, %v1485
        %v1487 = vadd.f32 %v1483, %v1486
        %vm1488 = vweird.f32 %v1482
        %vm1489 = vweird.f32 %v1483
        %vm1490 = vmor %vm1488, %vm1489
        %v1491 = vsel %vm1490, %v1483, %v1487
        %v1492 = vand.u32 2147483647, %v1482
        %vm1493 = vcmp.eq.f32.partialorder %v1492, 8.507059e+37
        %v1494 = vand.u32 %v1482, 2147483648
        %v1495 = vor.u32 1.1754944e-38, %v1494
        %v1496 = vsel %vm1493, %v1495, %v1491
        %v1497 = vmul.f32 1.0, %v1496
        %v1498 = vsel %vm463, %v1478, %v1497
        %v1499 = vmul.f32 %v1498, %v1442
        %1501 = vrot.lane.b32.xlu0 %v1498, 64
        %v1502 = vpop.permute.xlu0 %1501
        %v1504 = vmul.f32 %v1498, %v1502
        %1506 = vrot.lane.b32.xlu0 %v1504, 32
        %v1507 = vpop.permute.xlu0 %1506
        %v1509 = vadd.f32 %v1499, %v1507
        %v1510 = vtanh.pop %v1509
        %1512 = vrot.lane.b32.xlu0 %v1510, 64
        %v1513 = vpop.permute.xlu0 %1512
        %v1515 = vmul.f32 %v1498, %v1513
        %1517 = vrot.lane.b32.xlu0 %v1515, 32
        %v1518 = vpop.permute.xlu0 %1517
        %1520 = vst.msk [vmem:[#allocation4 + $0x20] sm:$0xff] %vm480, %v1518
        %v1521 = vld [vmem:[#allocation2 + $0x28] sm:$0xff]
        %v1522 = vsel %vm480, %v1518, 0
        %1524 = vmatpush.msra.mxu0 0.0
        %1525 = vmatpush.msra.mxu0 0.0
        %1526 = vmatpush.msra.mxu0 0.0
        %1527 = vmatpush.msra.mxu0 0.0
        %1528 = vmatpush.msra.mxu0 0.0
        %1529 = vmatpush.msra.mxu0 0.0
        %1530 = vmatpush.msra.mxu0 0.0
        %1531 = vmatpush.msra.mxu0 0.0
        %1532 = vmatpush.msra.mxu0 0.0
        %1533 = vmatpush.msra.mxu0 0.0
        %1534 = vmatpush.msra.mxu0 0.0
        %1535 = vmatpush.msra.mxu0 0.0
        %1536 = vmatpush.msra.mxu0 %v1187
        %1537 = vmatpush.msra.mxu0 %v1186
        %1538 = vmatpush.msra.mxu0 %v1185
        %1539 = vmatpush.msra.mxu0 %v1184
        %1540 = vmatmul.f32.gmra.mxu0 %v1522
        %v1541 = vpop.f32.mrf.mxu0
        %v1542 = vadd.f32 0.0, %v1541
        %1543 = vdwg.mxu0
        %v1544 = vadd.f32 %v1521, %v1542
        %v1545 = vtanh.pop %v1544
        %v1546 = vxor.u32 %v1544, 2147483648
        %v1547 = vmul.f32 %v1546, 1.442695
        %v1548 = vpow.pop %v1547
        %v1549 = vadd.f32 %v1548, 1.0
        %v1550 = vrcp.pop %v1549
        %v1551 = vmul.f32 %v1549, %v1550
        %v1552 = vsub.f32 1.0, %v1551
        %v1553 = vmul.f32 %v1550, %v1552
        %v1554 = vadd.f32 %v1550, %v1553
        %vm1555 = vweird.f32 %v1549
        %vm1556 = vweird.f32 %v1550
        %vm1557 = vmor %vm1555, %vm1556
        %v1558 = vsel %vm1557, %v1550, %v1554
        %v1559 = vand.u32 2147483647, %v1549
        %vm1560 = vcmp.eq.f32.partialorder %v1559, 8.507059e+37
        %v1561 = vand.u32 %v1549, 2147483648
        %v1562 = vor.u32 1.1754944e-38, %v1561
        %v1563 = vsel %vm1560, %v1562, %v1558
        %v1564 = vmul.f32 1.0, %v1563
        %v1565 = vsel %vm463, %v1545, %v1564
        %v1566 = vmul.f32 %v1565, %v1509
        %1568 = vrot.lane.b32.xlu0 %v1565, 64
        %v1569 = vpop.permute.xlu0 %1568
        %v1571 = vmul.f32 %v1565, %v1569
        %1573 = vrot.lane.b32.xlu0 %v1571, 32
        %v1574 = vpop.permute.xlu0 %1573
        %v1576 = vadd.f32 %v1566, %v1574
        %v1577 = vtanh.pop %v1576
        %1579 = vrot.lane.b32.xlu0 %v1577, 64
        %v1580 = vpop.permute.xlu0 %1579
        %v1582 = vmul.f32 %v1565, %v1580
        %1584 = vrot.lane.b32.xlu0 %v1582, 32
        %v1585 = vpop.permute.xlu0 %1584
        %1587 = vst.msk [vmem:[#allocation4 + $0x28] sm:$0xff] %vm480, %v1585
        %v1588 = vld [vmem:[#allocation2 + $0x30] sm:$0xff]
        %v1589 = vsel %vm480, %v1585, 0
        %1591 = vmatpush.msra.mxu0 0.0
        %1592 = vmatpush.msra.mxu0 0.0
        %1593 = vmatpush.msra.mxu0 0.0
        %1594 = vmatpush.msra.mxu0 0.0
        %1595 = vmatpush.msra.mxu0 0.0
        %1596 = vmatpush.msra.mxu0 0.0
        %1597 = vmatpush.msra.mxu0 0.0
        %1598 = vmatpush.msra.mxu0 0.0
        %1599 = vmatpush.msra.mxu0 0.0
        %1600 = vmatpush.msra.mxu0 0.0
        %1601 = vmatpush.msra.mxu0 0.0
        %1602 = vmatpush.msra.mxu0 0.0
        %1603 = vmatpush.msra.mxu0 %v1187
        %1604 = vmatpush.msra.mxu0 %v1186
        %1605 = vmatpush.msra.mxu0 %v1185
        %1606 = vmatpush.msra.mxu0 %v1184
        %1607 = vmatmul.f32.gmra.mxu0 %v1589
        %v1608 = vpop.f32.mrf.mxu0
        %v1609 = vadd.f32 0.0, %v1608
        %1610 = vdwg.mxu0
        %v1611 = vadd.f32 %v1588, %v1609
        %v1612 = vtanh.pop %v1611
        %v1613 = vxor.u32 %v1611, 2147483648
        %v1614 = vmul.f32 %v1613, 1.442695
        %v1615 = vpow.pop %v1614
        %v1616 = vadd.f32 %v1615, 1.0
        %v1617 = vrcp.pop %v1616
        %v1618 = vmul.f32 %v1616, %v1617
        %v1619 = vsub.f32 1.0, %v1618
        %v1620 = vmul.f32 %v1617, %v1619
        %v1621 = vadd.f32 %v1617, %v1620
        %vm1622 = vweird.f32 %v1616
        %vm1623 = vweird.f32 %v1617
        %vm1624 = vmor %vm1622, %vm1623
        %v1625 = vsel %vm1624, %v1617, %v1621
        %v1626 = vand.u32 2147483647, %v1616
        %vm1627 = vcmp.eq.f32.partialorder %v1626, 8.507059e+37
        %v1628 = vand.u32 %v1616, 2147483648
        %v1629 = vor.u32 1.1754944e-38, %v1628
        %v1630 = vsel %vm1627, %v1629, %v1625
        %v1631 = vmul.f32 1.0, %v1630
        %v1632 = vsel %vm463, %v1612, %v1631
        %v1633 = vmul.f32 %v1632, %v1576
        %1635 = vrot.lane.b32.xlu0 %v1632, 64
        %v1636 = vpop.permute.xlu0 %1635
        %v1638 = vmul.f32 %v1632, %v1636
        %1640 = vrot.lane.b32.xlu0 %v1638, 32
        %v1641 = vpop.permute.xlu0 %1640
        %v1643 = vadd.f32 %v1633, %v1641
        %v1644 = vtanh.pop %v1643
        %1646 = vrot.lane.b32.xlu0 %v1644, 64
        %v1647 = vpop.permute.xlu0 %1646
        %v1649 = vmul.f32 %v1632, %v1647
        %1651 = vrot.lane.b32.xlu0 %v1649, 32
        %v1652 = vpop.permute.xlu0 %1651
        %1654 = vst.msk [vmem:[#allocation4 + $0x30] sm:$0xff] %vm480, %v1652
        %v1655 = vld [vmem:[#allocation2 + $0x38] sm:$0xff]
        %v1656 = vsel %vm480, %v1652, 0
        %1658 = vmatpush.msra.mxu0 0.0
        %1659 = vmatpush.msra.mxu0 0.0
        %1660 = vmatpush.msra.mxu0 0.0
        %1661 = vmatpush.msra.mxu0 0.0
        %1662 = vmatpush.msra.mxu0 0.0
        %1663 = vmatpush.msra.mxu0 0.0
        %1664 = vmatpush.msra.mxu0 0.0
        %1665 = vmatpush.msra.mxu0 0.0
        %1666 = vmatpush.msra.mxu0 0.0
        %1667 = vmatpush.msra.mxu0 0.0
        %1668 = vmatpush.msra.mxu0 0.0
        %1669 = vmatpush.msra.mxu0 0.0
        %1670 = vmatpush.msra.mxu0 %v1187
        %1671 = vmatpush.msra.mxu0 %v1186
        %1672 = vmatpush.msra.mxu0 %v1185
        %1673 = vmatpush.msra.mxu0 %v1184
        %1674 = vmatmul.f32.gmra.mxu0 %v1656
        %v1675 = vpop.f32.mrf.mxu0
        %v1676 = vadd.f32 0.0, %v1675
        %1677 = vdwg.mxu0
        %v1678 = vadd.f32 %v1655, %v1676
        %v1679 = vtanh.pop %v1678
        %v1680 = vxor.u32 %v1678, 2147483648
        %v1681 = vmul.f32 %v1680, 1.442695
        %v1682 = vpow.pop %v1681
        %v1683 = vadd.f32 %v1682, 1.0
        %v1684 = vrcp.pop %v1683
        %v1685 = vmul.f32 %v1683, %v1684
        %v1686 = vsub.f32 1.0, %v1685
        %v1687 = vmul.f32 %v1684, %v1686
        %v1688 = vadd.f32 %v1684, %v1687
        %vm1689 = vweird.f32 %v1683
        %vm1690 = vweird.f32 %v1684
        %vm1691 = vmor %vm1689, %vm1690
        %v1692 = vsel %vm1691, %v1684, %v1688
        %v1693 = vand.u32 2147483647, %v1683
        %vm1694 = vcmp.eq.f32.partialorder %v1693, 8.507059e+37
        %v1695 = vand.u32 %v1683, 2147483648
        %v1696 = vor.u32 1.1754944e-38, %v1695
        %v1697 = vsel %vm1694, %v1696, %v1692
        %v1698 = vmul.f32 1.0, %v1697
        %v1699 = vsel %vm463, %v1679, %v1698
        %v1700 = vmul.f32 %v1699, %v1643
        %1702 = vrot.lane.b32.xlu0 %v1699, 64
        %v1703 = vpop.permute.xlu0 %1702
        %v1705 = vmul.f32 %v1699, %v1703
        %1707 = vrot.lane.b32.xlu0 %v1705, 32
        %v1708 = vpop.permute.xlu0 %1707
        %v1710 = vadd.f32 %v1700, %v1708
        %v1711 = vtanh.pop %v1710
        %1713 = vrot.lane.b32.xlu0 %v1711, 64
        %v1714 = vpop.permute.xlu0 %1713
        %v1716 = vmul.f32 %v1699, %v1714
        %1718 = vrot.lane.b32.xlu0 %v1716, 32
        %v1719 = vpop.permute.xlu0 %1718
        %1721 = vst.msk [vmem:[#allocation4 + $0x38] sm:$0xff] %vm480, %v1719
        %v1722 = vld [vmem:[#allocation4] sm:$0xff]
        %v1723 = vld [vmem:[#allocation4 + $0x8] sm:$0xff]
        %v1724 = vld [vmem:[#allocation4 + $0x10] sm:$0xff]
        %v1725 = vld [vmem:[#allocation4 + $0x18] sm:$0xff]
        %v1726 = vld [vmem:[#allocation4 + $0x20] sm:$0xff]
        %v1727 = vld [vmem:[#allocation4 + $0x28] sm:$0xff]
        %v1728 = vld [vmem:[#allocation4 + $0x30] sm:$0xff]
        %v1729 = vld [vmem:[#allocation4 + $0x38] sm:$0xff]
        %v1730 = vld [vmem:[%s420] sm:$0xff]
        %v1731 = vld [vmem:[%s420 + $0x8] sm:$0xff]
        %v1732 = vld [vmem:[%s420 + $0x10] sm:$0xff]
        %v1733 = vld [vmem:[%s420 + $0x18] sm:$0xff]
        %v1734 = vld [vmem:[%s458] sm:$0x1]
        %v1736 = vperm.slane %v1734, 0
        %v1739 = vsel %vm480, %v1722, 0
        %v1742 = vsel %vm480, %v1723, 0
        %v1745 = vsel %vm480, %v1724, 0
        %v1748 = vsel %vm480, %v1725, 0
        %v1751 = vsel %vm480, %v1726, 0
        %v1754 = vsel %vm480, %v1727, 0
        %v1757 = vsel %vm480, %v1728, 0
        %v1760 = vsel %vm480, %v1729, 0
        %1762 = vmatpush.msra.mxu0 0.0
        %1763 = vmatpush.msra.mxu0 0.0
        %1764 = vmatpush.msra.mxu0 0.0
        %1765 = vmatpush.msra.mxu0 0.0
        %1766 = vmatpush.msra.mxu0 0.0
        %1767 = vmatpush.msra.mxu0 0.0
        %1768 = vmatpush.msra.mxu0 0.0
        %1769 = vmatpush.msra.mxu0 0.0
        %1770 = vmatpush.msra.mxu0 0.0
        %1771 = vmatpush.msra.mxu0 0.0
        %1772 = vmatpush.msra.mxu0 0.0
        %1773 = vmatpush.msra.mxu0 0.0
        %1774 = vmatpush.msra.mxu0 %v1733
        %1775 = vmatpush.msra.mxu0 %v1732
        %1776 = vmatpush.msra.mxu0 %v1731
        %1777 = vmatpush.msra.mxu0 %v1730
        %1778 = vmatmul.f32.gmra.mxu0 %v1739
        %v1779 = vpop.f32.mrf.mxu0
        %v1780 = vadd.f32 %v1736, %v1779
        %1781 = vmatmul.f32.gmra.mxu0 %v1742
        %v1782 = vpop.f32.mrf.mxu0
        %v1783 = vadd.f32 %v1736, %v1782
        %1784 = vmatmul.f32.gmra.mxu0 %v1745
        %v1785 = vpop.f32.mrf.mxu0
        %v1786 = vadd.f32 %v1736, %v1785
        %1787 = vmatmul.f32.gmra.mxu0 %v1748
        %v1788 = vpop.f32.mrf.mxu0
        %v1789 = vadd.f32 %v1736, %v1788
        %1790 = vmatmul.f32.gmra.mxu0 %v1751
        %v1791 = vpop.f32.mrf.mxu0
        %v1792 = vadd.f32 %v1736, %v1791
        %1793 = vmatmul.f32.gmra.mxu0 %v1754
        %v1794 = vpop.f32.mrf.mxu0
        %v1795 = vadd.f32 %v1736, %v1794
        %1796 = vmatmul.f32.gmra.mxu0 %v1757
        %v1797 = vpop.f32.mrf.mxu0
        %v1798 = vadd.f32 %v1736, %v1797
        %1799 = vmatmul.f32.gmra.mxu0 %v1760
        %v1800 = vpop.f32.mrf.mxu0
        %v1801 = vadd.f32 %v1736, %v1800
        %1802 = vdwg.mxu0
        %1803 = vst [vmem:[%s455] sm:$0xff] %v1780
        %1804 = vst [vmem:[%s455 + $0x8] sm:$0xff] %v1783
        %1805 = vst [vmem:[%s455 + $0x10] sm:$0xff] %v1786
        %1806 = vst [vmem:[%s455 + $0x18] sm:$0xff] %v1789
        %1807 = vst [vmem:[%s455 + $0x20] sm:$0xff] %v1792
        %1808 = vst [vmem:[%s455 + $0x28] sm:$0xff] %v1795
        %1809 = vst [vmem:[%s455 + $0x30] sm:$0xff] %v1798
        %1810 = vst [vmem:[%s455 + $0x38] sm:$0xff] %v1801
        %s1811 = sand.u32 %s233, 1
        %s1812 = scalar_lea.sflag [#allocation7], %s1811
        %s1813 = sand.u32 %s233, 1
        %s1814 = smul.addr %s1813, 64
        %s1815 = scalar_lea.vmem [#allocation14], %s1814
        // Predicated region
        $region111: #{tpu_custom_call.1} parent=89 // pred_check
          %p1816 = pneg %p243
        $region112: #{tpu_custom_call.1} parent=89 // pred_check_branch
          %1818 = sbr.rel (%p1816) target = $region114
        $region113: #{tpu_custom_call.1} parent=89 // pred_region
          %1820 = vsyncadd %s1812, 0
          %s1821 = smul.addr %s26, 8
          %s1822 = scalar_lea.hbm %s9, %s1821
          %s1823 = sshll.u32 %s1815, 4
          %s1824 = int_to_ptr.vmem [resolvable:$true] %s1823
          %s1825 = sshll.u32 %s1822, 4
          %s1826 = int_to_ptr.hbm [resolvable:$true] %s1825
          %1831 = dma.vmem_to_hbm [thread:$0]  %s1824, 1024, %s1826, %s1812, 128, 384, 8
        $region114: #{tpu_custom_call.1} parent=89 // pred_fallthru
          _
      $region90: #{tpu_custom_call.1} parent=5 // pred_fallthru
        _
      %p1832 = scmp.le.s32.totalorder 2, %s21
      // Predicated region
      $region115: #{tpu_custom_call.1} parent=5 // pred_check
        %p1833 = pneg %p1832
      $region116: #{tpu_custom_call.1} parent=5 // pred_check_branch
        %1835 = sbr.rel (%p1833) target = $region118
      $region117: #{tpu_custom_call.1} parent=5 // pred_region
        %s1836 = ssub.s32 %s21, 2
        // Predicated region
        $region119: #{tpu_custom_call.1} parent=117 // pred_check
          %p1837 = pneg %p249
        $region120: #{tpu_custom_call.1} parent=117 // pred_check_branch
          %1839 = sbr.rel (%p1837) target = $region122
        $region121: #{tpu_custom_call.1} parent=117 // pred_region
          %s1840 = sand.u32 %s234, 1
          %s1841 = scalar_lea.sflag [#allocation7], %s1840
          %s1842 = sand.u32 %s234, 1
          %s1843 = smul.addr %s1842, 64
          %s1844 = scalar_lea.vmem [#allocation14], %s1843
          %1846 = dma.done %s1841, 1024
        $region122: #{tpu_custom_call.1} parent=117 // pred_fallthru
          _
      $region118: #{tpu_custom_call.1} parent=5 // pred_fallthru
        _
    $region6: #{tpu_custom_call.1} parent=1 // loop_footer
      %s25 = sadd.s32 1, %s21
    $region7: #{tpu_custom_call.1} parent=1 // loop_footer_branch
      %20 = sbr.rel target = $region3
    $region8: #{tpu_custom_call.1} parent=1 // loop_exit
      _
    %1847 = vsyncpa [#allocation6], 1
    %s1848 = scalar_lea.sflag [#allocation6], 1
    %1849 = vsyncpa %s1848, 1
    %1850 = vsyncpa [#allocation9], 1
    %1851 = vsyncpa [#allocation12], 1
    %1852 = vsyncpa [#allocation7], 1
    %s1853 = scalar_lea.sflag [#allocation7], 1
    %1854 = vsyncpa %s1853, 1

</llo_original>
